<compile_context>
chip_gen: v7x
topology: tpu7x:2x2x1
jax: 0.10.0
libtpu: 0.0.40
codegen_flags: <defaults>
</compile_context>

<pallas_src>
import functools

import jax
import jax.numpy as jnp
from jax.experimental import pallas as pl
from jax.experimental.pallas import tpu as pltpu


def _round_up(x, m):
    return ((x + m - 1) // m) * m


def _auto_config():
    """(nsplit, tile_cols).  The 2-way 'parallel' outer split only pays off on
    dual-TensorCore v7x; single-TC v5e/v6e keep the whole cell axis on the
    inner accumulation axis (longer pipeline, no extra padding/writeback)."""
    try:
        kind = jax.devices()[0].device_kind.lower()
    except Exception:
        kind = ""
    if "v7" in kind:
        return 2, 4096      # dual TC + 3.2 TB/s HBM: amortize per-step overhead
    return 1, 2048


def _yolo_loss_kernel(pred_ref, targ_ref, anc_ref, out_ref, acc_ref, *,
                      num_classes, nchunks, lambda_box, lambda_obj,
                      lambda_noobj, lambda_class):
    C = num_classes
    CH = 128                      # one vreg of lanes per sub-tile
    f32 = jnp.float32
    i = pl.program_id(1)

    @pl.when(i == 0)
    def _init():
        acc_ref[...] = jnp.zeros_like(acc_ref)

    box_acc = jnp.zeros((8, CH), f32)
    obj_acc = jnp.zeros((8, CH), f32)
    noobj_acc = jnp.zeros((8, CH), f32)
    cls_acc = jnp.zeros((8, CH), f32)

    # Static unrolled loop over 128-lane sub-tiles: every slice below selects
    # whole vregs (static lane offsets, full 8-sublane extent), intermediates
    # are 1 vreg each, and the accumulators stay in registers until the single
    # scratch update at the end of the grid step.
    for j in range(nchunks):
        ls = pl.ds(j * CH, CH)

        def rp(c, _ls=ls):        # pred channel c, this lane chunk -> f32
            return pred_ref[c, :, _ls].astype(f32)

        def rt(c, _ls=ls):        # targ channel c, this lane chunk -> f32
            return targ_ref[c, :, _ls].astype(f32)

        p_obj = rp(C)
        p_x = rp(C + 1)
        p_y = rp(C + 2)
        p_w = rp(C + 3)
        p_h = rp(C + 4)

        t_obj = rt(C)             # 1 / 0 / -1 (pad)  — exact in bf16
        t_x = rt(C + 1)
        t_y = rt(C + 2)
        t_w = rt(C + 3)
        t_h = rt(C + 4)

        a_w = anc_ref[0, :, ls].astype(f32)   # pad cells carry 1.0
        a_h = anc_ref[1, :, ls].astype(f32)

        obj_m = (t_obj == 1.0).astype(f32)
        noobj_m = (t_obj == 0.0).astype(f32)

        # Shared transcendentals (single EUP slot, plenty of slack here).
        s_obj = jax.nn.sigmoid(p_obj)
        s_x = jax.nn.sigmoid(p_x)
        s_y = jax.nn.sigmoid(p_y)
        bw = jnp.exp(p_w) * a_w
        bh = jnp.exp(p_h) * a_h

        # ---- IoU in midpoint format ----
        hw1 = 0.5 * bw
        hh1 = 0.5 * bh
        hw2 = 0.5 * t_w
        hh2 = 0.5 * t_h
        iw = jnp.maximum(jnp.minimum(s_x + hw1, t_x + hw2)
                         - jnp.maximum(s_x - hw1, t_x - hw2), 0.0)
        ih = jnp.maximum(jnp.minimum(s_y + hh1, t_y + hh2)
                         - jnp.maximum(s_y - hh1, t_y - hh2), 0.0)
        inter = iw * ih
        # bw*bh is non-negative by construction -> no abs on box1 area.
        union = bw * bh + jnp.abs(t_w * t_h) - inter + 1e-6
        r = pl.reciprocal(union, approx=True)
        r = r * (2.0 - union * r)            # one Newton-Raphson refinement
        iou = inter * r

        # log-wh target computed here instead of in the wrapper.
        t_wlog = jnp.log(1e-16 + t_w / a_w)
        t_hlog = jnp.log(1e-16 + t_h / a_h)

        od = s_obj - iou * t_obj             # object loss diff
        nd = s_obj - t_obj                   # no-object loss diff
        xd = s_x - t_x
        yd = s_y - t_y
        wd = p_w - t_wlog
        hd = p_h - t_hlog

        # Class term: unrolled per-channel loop, no (C, 8, T) intermediate.
        cls_sq = jnp.zeros((8, CH), f32)
        for c in range(C):
            d = rp(c) - rt(c)
            cls_sq = cls_sq + d * d

        box_acc = box_acc + (xd * xd + yd * yd + wd * wd + hd * hd) * obj_m
        obj_acc = obj_acc + od * od * obj_m
        noobj_acc = noobj_acc + nd * nd * noobj_m
        cls_acc = cls_acc + cls_sq * obj_m

    acc_ref[0] += box_acc
    acc_ref[1] += obj_acc
    acc_ref[2] += noobj_acc
    acc_ref[3] += cls_acc

    @pl.when(i == pl.num_programs(1) - 1)
    def _finalize():
        box_t = lambda_box * acc_ref[0]
        obj_t = lambda_obj * acc_ref[1]
        noobj_t = lambda_noobj * acc_ref[2]
        cls_t = lambda_class * acc_ref[3]
        total = box_t + obj_t + noobj_t + cls_t
        out_ref[0] = jnp.concatenate([total, box_t, obj_t, noobj_t, cls_t],
                                     axis=0)   # (40, 128) lane-dense block


def yolov2_loss(predictions, target, anchors, *, split_size=13, num_boxes=5,
                num_classes=20, tile_cols=None, nsplit=None):
    """predictions: (B, A*(C+5), S, S) NCHW; target: (B, A, S, S, C+5);
    anchors: (A, 2).  Returns (total, 10*box, 100*obj, 0.5*noobj, 1*class)."""
    S, A, C = split_size, num_boxes, num_classes
    F = C + 5
    B = target.shape[0]
    N = B * A * S * S
    f32 = jnp.float32
    bf16 = jnp.bfloat16

    auto_nsplit, auto_tc = _auto_config()
    if nsplit is None:
        nsplit = auto_nsplit
    if tile_cols is None:
        tile_cols = auto_tc

    # ---- pack predictions: (B, A*F, S, S) -> (F, N) channel-major, bf16 ----
    pred = predictions.reshape(B, A, F, S, S).transpose(2, 0, 1, 3, 4)
    pred = pred.reshape(F, N).astype(bf16)

    # ---- pack target: (B, A, S, S, F) -> (F, N) channel-major, bf16 ----
    # (log-wh target is computed in-kernel; no extra channels / wrapper pass)
    targ = target.transpose(4, 0, 1, 2, 3).reshape(F, N).astype(bf16)

    # ---- per-cell anchors (2, N), bf16 ----
    anc = jnp.broadcast_to(anchors.astype(bf16).reshape(1, A, 1, 1, 2),
                           (B, A, S, S, 2))
    anc = anc.transpose(4, 0, 1, 2, 3).reshape(2, N)

    # ---- pad cell axis; repack cells as (?, 8, ncols) full-vreg planes ----
    ncols_raw = -(-N // 8)
    tc = min(tile_cols, _round_up(-(-ncols_raw // nsplit), 128))
    tc = max(128, (tc // 128) * 128)
    ncols = _round_up(ncols_raw, tc * nsplit)
    n_pad = 8 * ncols - N

    pred = jnp.pad(pred, ((0, 0), (0, n_pad)))
    targ = jnp.pad(targ, ((0, 0), (0, n_pad)))
    # Pad anchors with 1.0 so the in-kernel log / reciprocal stay finite on
    # pad cells (which are then zeroed by the obj/noobj masks).
    anc = jnp.pad(anc, ((0, 0), (0, n_pad)), constant_values=1.0)
    if n_pad:
        targ = targ.at[C, N:].set(-1.0)   # pad cells: neither obj nor noobj
    pred = pred.reshape(F, 8, ncols)
    targ = targ.reshape(F, 8, ncols)
    anc = anc.reshape(2, 8, ncols)

    inner = ncols // (tc * nsplit)

    def in_map(c, i):
        return (0, 0, c * inner + i)

    kern = functools.partial(_yolo_loss_kernel, num_classes=C,
                             nchunks=tc // 128,
                             lambda_box=10.0, lambda_obj=100.0,
                             lambda_noobj=0.5, lambda_class=1.0)

    n_cells = 8 * ncols
    # TODO(synk): if an xprof trace still shows exposed DMA per step, add
    # pipeline_mode=pl.Buffered(3) to the two big input BlockSpecs.
    out = pl.pallas_call(
        kern,
        out_shape=jax.ShapeDtypeStruct((nsplit, 5 * 8, 128), f32),
        grid_spec=pltpu.PrefetchScalarGridSpec(
            num_scalar_prefetch=0,
            grid=(nsplit, inner),
            in_specs=[pl.BlockSpec((F, 8, tc), in_map),
                      pl.BlockSpec((F, 8, tc), in_map),
                      pl.BlockSpec((2, 8, tc), in_map)],
            out_specs=pl.BlockSpec((1, 5 * 8, 128), lambda c, i: (c, 0, 0)),
            scratch_shapes=[pltpu.VMEM((4, 8, 128), f32)],
        ),
        compiler_params=pltpu.CompilerParams(
            dimension_semantics=("parallel", "arbitrary"),
            vmem_limit_bytes=48 * 1024 * 1024,      # > default scoped limit,
                                                    # < v7x 64 MiB physical
            allow_input_fusion=[True, True, True]), # let XLA fuse the repack
        cost_estimate=pl.CostEstimate(
            flops=int(170 * n_cells),
            transcendentals=int(8 * n_cells),
            bytes_accessed=int(2 * n_cells * (2 * F + 2)
                               + 4 * nsplit * 5 * 8 * 128)),
    )(pred, targ, anc)

    # (nsplit, 5, 8, 128) -> 5 scalars (tiny XLA reduce in the wrapper).
    sums = out.reshape(nsplit, 5, 8, 128).sum(axis=(0, 2, 3))
    return sums[0], sums[1], sums[2], sums[3], sums[4]


def _reference_loss(predictions, target, anchors, S, A, C):
    """Pure-JAX f32 reference matching the PyTorch module semantics."""
    pred = predictions.reshape(-1, A, C + 5, S, S).transpose(0, 1, 3, 4, 2)
    anc = anchors.reshape(1, A, 1, 1, 2)
    sig = jax.nn.sigmoid

    obj = (target[..., C] == 1).astype(jnp.float32)[..., None]
    noobj = (target[..., C] == 0).astype(jnp.float32)[..., None]

    bp_xy = sig(pred[..., C + 1:C + 3])
    bp_wh = jnp.exp(pred[..., C + 3:C + 5]) * anc
    t_xy = target[..., C + 1:C + 3]
    t_wh = target[..., C + 3:C + 5]

    b1x1 = bp_xy[..., 0:1] - bp_wh[..., 0:1] / 2
    b1y1 = bp_xy[..., 1:2] - bp_wh[..., 1:2] / 2
    b1x2 = bp_xy[..., 0:1] + bp_wh[..., 0:1] / 2
    b1y2 = bp_xy[..., 1:2] + bp_wh[..., 1:2] / 2
    b2x1 = t_xy[..., 0:1] - t_wh[..., 0:1] / 2
    b2y1 = t_xy[..., 1:2] - t_wh[..., 1:2] / 2
    b2x2 = t_xy[..., 0:1] + t_wh[..., 0:1] / 2
    b2y2 = t_xy[..., 1:2] + t_wh[..., 1:2] / 2
    inter = (jnp.maximum(jnp.minimum(b1x2, b2x2) - jnp.maximum(b1x1, b2x1), 0.) *
             jnp.maximum(jnp.minimum(b1y2, b2y2) - jnp.maximum(b1y1, b2y1), 0.))
    a1 = jnp.abs((b1x2 - b1x1) * (b1y2 - b1y1))
    a2 = jnp.abs((b2x2 - b2x1) * (b2y2 - b2y1))
    ious = inter / (a1 + a2 - inter + 1e-6)

    p_obj = pred[..., C:C + 1]
    object_loss = jnp.sum(((sig(p_obj) - ious * target[..., C:C + 1]) ** 2) * obj)
    xyd = sig(pred[..., C + 1:C + 3]) - t_xy
    whd = pred[..., C + 3:C + 5] - jnp.log(1e-16 + t_wh / anc)
    box_loss = jnp.sum((xyd ** 2 + whd ** 2) * obj)
    no_object_loss = jnp.sum(((sig(p_obj) - target[..., C:C + 1]) ** 2) * noobj)
    class_loss = jnp.sum(((pred[..., 0:C] - target[..., 0:C]) ** 2) * obj)

    box_t = 10.0 * box_loss
    obj_t = 100.0 * object_loss
    noobj_t = 0.5 * no_object_loss
    cls_t = 1.0 * class_loss
    return box_t + obj_t + noobj_t + cls_t, box_t, obj_t, noobj_t, cls_t


if __name__ == "__main__":
    B, A, C, S = 2, 5, 20, 13   # small batch, module-default anchors/classes/grid

    key = jax.random.PRNGKey(0)
    k1, k2, k3, k4, k5 = jax.random.split(key, 5)
    predictions = 0.5 * jax.random.normal(k1, (B, A * (C + 5), S, S), jnp.float32)
    t_cls = jax.random.uniform(k2, (B, A, S, S, C), jnp.float32)
    t_obj = (jax.random.uniform(k3, (B, A, S, S, 1)) < 0.3).astype(jnp.float32)
    t_xy = jax.random.uniform(k4, (B, A, S, S, 2), jnp.float32)
    t_wh = 0.1 + 4.0 * jax.random.uniform(k5, (B, A, S, S, 2), jnp.float32)
    target = jnp.concatenate([t_cls, t_obj, t_xy, t_wh], axis=-1)

    # deterministic anchors (standard YOLOv2 VOC anchors), shape (A, 2)
    anchors = jnp.array([[1.3221, 1.73145], [3.19275, 4.00944],
                         [5.05587, 8.09892], [9.47112, 4.84053],
                         [11.2364, 10.0071]], jnp.float32)

    loss_fn = jax.jit(functools.partial(yolov2_loss, split_size=S,
                                        num_boxes=A, num_classes=C))
    losses = loss_fn(predictions, target, anchors)
    losses = jax.block_until_ready(losses)

    ref = _reference_loss(predictions, target, anchors, S, A, C)
    for got, want in zip(losses, ref):
        assert jnp.allclose(got, want, rtol=1e-2, atol=1e-3), (got, want)

    print("KERNEL_OK")
</pallas_src>

<mosaic_0001>
module attributes {stable_mosaic.version = 11 : i64} {
  func.func @_yolo_loss_kernel(%arg0: i32, %arg1: i32, %arg2: memref<25x8x256xbf16, #tpu.memory_space<vmem>>, %arg3: memref<25x8x256xbf16, #tpu.memory_space<vmem>>, %arg4: memref<2x8x256xbf16, #tpu.memory_space<vmem>>, %arg5: memref<1x40x128xf32, #tpu.memory_space<vmem>>, %arg6: memref<4x8x128xf32, #tpu.memory_space<vmem>>) attributes {dimension_semantics = [#tpu.dimension_semantics<parallel>, #tpu.dimension_semantics<arbitrary>], iteration_bounds = array<i64: 1, 1>, scalar_prefetch = 0 : i64, scratch_operands = 1 : i64, tpu.core_type = #tpu.core_type<tc>, window_params = [{transform_indices = @transform_0, window_bounds = array<i64: 25, 8, 256>}, {transform_indices = @transform_1, window_bounds = array<i64: 25, 8, 256>}, {transform_indices = @transform_2, window_bounds = array<i64: 2, 8, 256>}, {transform_indices = @transform_3, window_bounds = array<i64: 1, 40, 128>}]} {
    %c0_i32 = arith.constant 0 : i32
    %0 = arith.cmpi eq, %arg1, %c0_i32 : i32
    %1 = arith.extui %0 : i1 to i32
    %c0_i32_0 = arith.constant 0 : i32
    %2 = arith.cmpi ne, %1, %c0_i32_0 : i32
    scf.if %2 {
      %cst_348 = arith.constant 0.000000e+00 : f32
      %666 = vector.broadcast %cst_348 : f32 to vector<4x8x128xf32>
      %c0_349 = arith.constant 0 : index
      %c0_350 = arith.constant 0 : index
      %c0_351 = arith.constant 0 : index
      %667 = vector.load %arg6[%c0_349, %c0_350, %c0_351] : memref<4x8x128xf32, #tpu.memory_space<vmem>>, vector<4x8x128xf32>
      tpu.vector_store %arg6[%c0_349, %c0_350, %c0_351], %666 {strides = array<i32>} : memref<4x8x128xf32, #tpu.memory_space<vmem>>, vector<4x8x128xf32>,
    } else {
    }
    %cst = arith.constant 0.000000e+00 : f32
    %3 = vector.broadcast %cst : f32 to vector<8x128xf32>
    %cst_1 = arith.constant 0.000000e+00 : f32
    %4 = vector.broadcast %cst_1 : f32 to vector<8x128xf32>
    %cst_2 = arith.constant 0.000000e+00 : f32
    %5 = vector.broadcast %cst_2 : f32 to vector<8x128xf32>
    %cst_3 = arith.constant 0.000000e+00 : f32
    %6 = vector.broadcast %cst_3 : f32 to vector<8x128xf32>
    %c20 = arith.constant 20 : index
    %c0 = arith.constant 0 : index
    %c0_4 = arith.constant 0 : index
    %7 = vector.load %arg2[%c20, %c0, %c0_4] : memref<25x8x256xbf16, #tpu.memory_space<vmem>>, vector<1x8x128xbf16>
    %8 = vector.shape_cast %7 : vector<1x8x128xbf16> to vector<8x128xbf16>
    %9 = arith.extf %8 : vector<8x128xbf16> to vector<8x128xf32>
    %c21 = arith.constant 21 : index
    %c0_5 = arith.constant 0 : index
    %c0_6 = arith.constant 0 : index
    %10 = vector.load %arg2[%c21, %c0_5, %c0_6] : memref<25x8x256xbf16, #tpu.memory_space<vmem>>, vector<1x8x128xbf16>
    %11 = vector.shape_cast %10 : vector<1x8x128xbf16> to vector<8x128xbf16>
    %12 = arith.extf %11 : vector<8x128xbf16> to vector<8x128xf32>
    %c22 = arith.constant 22 : index
    %c0_7 = arith.constant 0 : index
    %c0_8 = arith.constant 0 : index
    %13 = vector.load %arg2[%c22, %c0_7, %c0_8] : memref<25x8x256xbf16, #tpu.memory_space<vmem>>, vector<1x8x128xbf16>
    %14 = vector.shape_cast %13 : vector<1x8x128xbf16> to vector<8x128xbf16>
    %15 = arith.extf %14 : vector<8x128xbf16> to vector<8x128xf32>
    %c23 = arith.constant 23 : index
    %c0_9 = arith.constant 0 : index
    %c0_10 = arith.constant 0 : index
    %16 = vector.load %arg2[%c23, %c0_9, %c0_10] : memref<25x8x256xbf16, #tpu.memory_space<vmem>>, vector<1x8x128xbf16>
    %17 = vector.shape_cast %16 : vector<1x8x128xbf16> to vector<8x128xbf16>
    %18 = arith.extf %17 : vector<8x128xbf16> to vector<8x128xf32>
    %c24 = arith.constant 24 : index
    %c0_11 = arith.constant 0 : index
    %c0_12 = arith.constant 0 : index
    %19 = vector.load %arg2[%c24, %c0_11, %c0_12] : memref<25x8x256xbf16, #tpu.memory_space<vmem>>, vector<1x8x128xbf16>
    %20 = vector.shape_cast %19 : vector<1x8x128xbf16> to vector<8x128xbf16>
    %21 = arith.extf %20 : vector<8x128xbf16> to vector<8x128xf32>
    %c20_13 = arith.constant 20 : index
    %c0_14 = arith.constant 0 : index
    %c0_15 = arith.constant 0 : index
    %22 = vector.load %arg3[%c20_13, %c0_14, %c0_15] : memref<25x8x256xbf16, #tpu.memory_space<vmem>>, vector<1x8x128xbf16>
    %23 = vector.shape_cast %22 : vector<1x8x128xbf16> to vector<8x128xbf16>
    %24 = arith.extf %23 : vector<8x128xbf16> to vector<8x128xf32>
    %c21_16 = arith.constant 21 : index
    %c0_17 = arith.constant 0 : index
    %c0_18 = arith.constant 0 : index
    %25 = vector.load %arg3[%c21_16, %c0_17, %c0_18] : memref<25x8x256xbf16, #tpu.memory_space<vmem>>, vector<1x8x128xbf16>
    %26 = vector.shape_cast %25 : vector<1x8x128xbf16> to vector<8x128xbf16>
    %27 = arith.extf %26 : vector<8x128xbf16> to vector<8x128xf32>
    %c22_19 = arith.constant 22 : index
    %c0_20 = arith.constant 0 : index
    %c0_21 = arith.constant 0 : index
    %28 = vector.load %arg3[%c22_19, %c0_20, %c0_21] : memref<25x8x256xbf16, #tpu.memory_space<vmem>>, vector<1x8x128xbf16>
    %29 = vector.shape_cast %28 : vector<1x8x128xbf16> to vector<8x128xbf16>
    %30 = arith.extf %29 : vector<8x128xbf16> to vector<8x128xf32>
    %c23_22 = arith.constant 23 : index
    %c0_23 = arith.constant 0 : index
    %c0_24 = arith.constant 0 : index
    %31 = vector.load %arg3[%c23_22, %c0_23, %c0_24] : memref<25x8x256xbf16, #tpu.memory_space<vmem>>, vector<1x8x128xbf16>
    %32 = vector.shape_cast %31 : vector<1x8x128xbf16> to vector<8x128xbf16>
    %33 = arith.extf %32 : vector<8x128xbf16> to vector<8x128xf32>
    %c24_25 = arith.constant 24 : index
    %c0_26 = arith.constant 0 : index
    %c0_27 = arith.constant 0 : index
    %34 = vector.load %arg3[%c24_25, %c0_26, %c0_27] : memref<25x8x256xbf16, #tpu.memory_space<vmem>>, vector<1x8x128xbf16>
    %35 = vector.shape_cast %34 : vector<1x8x128xbf16> to vector<8x128xbf16>
    %36 = arith.extf %35 : vector<8x128xbf16> to vector<8x128xf32>
    %c0_28 = arith.constant 0 : index
    %c0_29 = arith.constant 0 : index
    %c0_30 = arith.constant 0 : index
    %37 = vector.load %arg4[%c0_28, %c0_29, %c0_30] : memref<2x8x256xbf16, #tpu.memory_space<vmem>>, vector<1x8x128xbf16>
    %38 = vector.shape_cast %37 : vector<1x8x128xbf16> to vector<8x128xbf16>
    %39 = arith.extf %38 : vector<8x128xbf16> to vector<8x128xf32>
    %c1 = arith.constant 1 : index
    %c0_31 = arith.constant 0 : index
    %c0_32 = arith.constant 0 : index
    %40 = vector.load %arg4[%c1, %c0_31, %c0_32] : memref<2x8x256xbf16, #tpu.memory_space<vmem>>, vector<1x8x128xbf16>
    %41 = vector.shape_cast %40 : vector<1x8x128xbf16> to vector<8x128xbf16>
    %42 = arith.extf %41 : vector<8x128xbf16> to vector<8x128xf32>
    %cst_33 = arith.constant 1.000000e+00 : f32
    %43 = vector.broadcast %cst_33 : f32 to vector<8x128xf32>
    %44 = arith.cmpf oeq, %24, %43 : vector<8x128xf32>
    %45 = arith.extui %44 : vector<8x128xi1> to vector<8x128xi32>
    %46 = arith.sitofp %45 : vector<8x128xi32> to vector<8x128xf32>
    %cst_34 = arith.constant 0.000000e+00 : f32
    %47 = vector.broadcast %cst_34 : f32 to vector<8x128xf32>
    %48 = arith.cmpf oeq, %24, %47 : vector<8x128xf32>
    %49 = arith.extui %48 : vector<8x128xi1> to vector<8x128xi32>
    %50 = arith.sitofp %49 : vector<8x128xi32> to vector<8x128xf32>
    %51 = arith.negf %9 : vector<8x128xf32>
    %52 = math.exp %51 : vector<8x128xf32>
    %cst_35 = arith.constant 1.000000e+00 : f32
    %53 = vector.broadcast %cst_35 : f32 to vector<8x128xf32>
    %54 = arith.addf %53, %52 : vector<8x128xf32>
    %55 = arith.divf %53, %54 : vector<8x128xf32>
    %56 = arith.negf %12 : vector<8x128xf32>
    %57 = math.exp %56 : vector<8x128xf32>
    %cst_36 = arith.constant 1.000000e+00 : f32
    %58 = vector.broadcast %cst_36 : f32 to vector<8x128xf32>
    %59 = arith.addf %58, %57 : vector<8x128xf32>
    %60 = arith.divf %58, %59 : vector<8x128xf32>
    %61 = arith.negf %15 : vector<8x128xf32>
    %62 = math.exp %61 : vector<8x128xf32>
    %cst_37 = arith.constant 1.000000e+00 : f32
    %63 = vector.broadcast %cst_37 : f32 to vector<8x128xf32>
    %64 = arith.addf %63, %62 : vector<8x128xf32>
    %65 = arith.divf %63, %64 : vector<8x128xf32>
    %66 = math.exp %18 : vector<8x128xf32>
    %67 = arith.mulf %66, %39 : vector<8x128xf32>
    %68 = math.exp %21 : vector<8x128xf32>
    %69 = arith.mulf %68, %42 : vector<8x128xf32>
    %cst_38 = arith.constant 5.000000e-01 : f32
    %70 = vector.broadcast %cst_38 : f32 to vector<8x128xf32>
    %71 = arith.mulf %70, %67 : vector<8x128xf32>
    %cst_39 = arith.constant 5.000000e-01 : f32
    %72 = vector.broadcast %cst_39 : f32 to vector<8x128xf32>
    %73 = arith.mulf %72, %69 : vector<8x128xf32>
    %cst_40 = arith.constant 5.000000e-01 : f32
    %74 = vector.broadcast %cst_40 : f32 to vector<8x128xf32>
    %75 = arith.mulf %74, %33 : vector<8x128xf32>
    %cst_41 = arith.constant 5.000000e-01 : f32
    %76 = vector.broadcast %cst_41 : f32 to vector<8x128xf32>
    %77 = arith.mulf %76, %36 : vector<8x128xf32>
    %78 = arith.addf %60, %71 : vector<8x128xf32>
    %79 = arith.addf %27, %75 : vector<8x128xf32>
    %80 = arith.minimumf %78, %79 : vector<8x128xf32>
    %81 = arith.subf %60, %71 : vector<8x128xf32>
    %82 = arith.subf %27, %75 : vector<8x128xf32>
    %83 = arith.maximumf %81, %82 : vector<8x128xf32>
    %84 = arith.subf %80, %83 : vector<8x128xf32>
    %cst_42 = arith.constant 0.000000e+00 : f32
    %85 = vector.broadcast %cst_42 : f32 to vector<8x128xf32>
    %86 = arith.maximumf %84, %85 : vector<8x128xf32>
    %87 = arith.addf %65, %73 : vector<8x128xf32>
    %88 = arith.addf %30, %77 : vector<8x128xf32>
    %89 = arith.minimumf %87, %88 : vector<8x128xf32>
    %90 = arith.subf %65, %73 : vector<8x128xf32>
    %91 = arith.subf %30, %77 : vector<8x128xf32>
    %92 = arith.maximumf %90, %91 : vector<8x128xf32>
    %93 = arith.subf %89, %92 : vector<8x128xf32>
    %cst_43 = arith.constant 0.000000e+00 : f32
    %94 = vector.broadcast %cst_43 : f32 to vector<8x128xf32>
    %95 = arith.maximumf %93, %94 : vector<8x128xf32>
    %96 = arith.mulf %86, %95 : vector<8x128xf32>
    %97 = arith.mulf %67, %69 : vector<8x128xf32>
    %98 = arith.mulf %33, %36 : vector<8x128xf32>
    %99 = math.absf %98 : vector<8x128xf32>
    %100 = arith.addf %97, %99 : vector<8x128xf32>
    %101 = arith.subf %100, %96 : vector<8x128xf32>
    %cst_44 = arith.constant 9.99999997E-7 : f32
    %102 = vector.broadcast %cst_44 : f32 to vector<8x128xf32>
    %103 = arith.addf %101, %102 : vector<8x128xf32>
    %104 = tpu.reciprocal %103 {approx = true} : vector<8x128xf32> -> vector<8x128xf32>
    %105 = arith.mulf %103, %104 : vector<8x128xf32>
    %cst_45 = arith.constant 2.000000e+00 : f32
    %106 = vector.broadcast %cst_45 : f32 to vector<8x128xf32>
    %107 = arith.subf %106, %105 : vector<8x128xf32>
    %108 = arith.mulf %104, %107 : vector<8x128xf32>
    %109 = arith.mulf %96, %108 : vector<8x128xf32>
    %110 = arith.divf %33, %39 : vector<8x128xf32>
    %cst_46 = arith.constant 1.000000e-16 : f32
    %111 = vector.broadcast %cst_46 : f32 to vector<8x128xf32>
    %112 = arith.addf %111, %110 : vector<8x128xf32>
    %113 = math.log %112 : vector<8x128xf32>
    %114 = arith.divf %36, %42 : vector<8x128xf32>
    %cst_47 = arith.constant 1.000000e-16 : f32
    %115 = vector.broadcast %cst_47 : f32 to vector<8x128xf32>
    %116 = arith.addf %115, %114 : vector<8x128xf32>
    %117 = math.log %116 : vector<8x128xf32>
    %118 = arith.mulf %109, %24 : vector<8x128xf32>
    %119 = arith.subf %55, %118 : vector<8x128xf32>
    %120 = arith.subf %55, %24 : vector<8x128xf32>
    %121 = arith.subf %60, %27 : vector<8x128xf32>
    %122 = arith.subf %65, %30 : vector<8x128xf32>
    %123 = arith.subf %18, %113 : vector<8x128xf32>
    %124 = arith.subf %21, %117 : vector<8x128xf32>
    %cst_48 = arith.constant 0.000000e+00 : f32
    %125 = vector.broadcast %cst_48 : f32 to vector<8x128xf32>
    %c0_49 = arith.constant 0 : index
    %c0_50 = arith.constant 0 : index
    %c0_51 = arith.constant 0 : index
    %126 = vector.load %arg2[%c0_49, %c0_50, %c0_51] : memref<25x8x256xbf16, #tpu.memory_space<vmem>>, vector<1x8x128xbf16>
    %127 = vector.shape_cast %126 : vector<1x8x128xbf16> to vector<8x128xbf16>
    %128 = arith.extf %127 : vector<8x128xbf16> to vector<8x128xf32>
    %c0_52 = arith.constant 0 : index
    %c0_53 = arith.constant 0 : index
    %c0_54 = arith.constant 0 : index
    %129 = vector.load %arg3[%c0_52, %c0_53, %c0_54] : memref<25x8x256xbf16, #tpu.memory_space<vmem>>, vector<1x8x128xbf16>
    %130 = vector.shape_cast %129 : vector<1x8x128xbf16> to vector<8x128xbf16>
    %131 = arith.extf %130 : vector<8x128xbf16> to vector<8x128xf32>
    %132 = arith.subf %128, %131 : vector<8x128xf32>
    %133 = arith.mulf %132, %132 : vector<8x128xf32>
    %134 = arith.addf %125, %133 : vector<8x128xf32>
    %c1_55 = arith.constant 1 : index
    %c0_56 = arith.constant 0 : index
    %c0_57 = arith.constant 0 : index
    %135 = vector.load %arg2[%c1_55, %c0_56, %c0_57] : memref<25x8x256xbf16, #tpu.memory_space<vmem>>, vector<1x8x128xbf16>
    %136 = vector.shape_cast %135 : vector<1x8x128xbf16> to vector<8x128xbf16>
    %137 = arith.extf %136 : vector<8x128xbf16> to vector<8x128xf32>
    %c1_58 = arith.constant 1 : index
    %c0_59 = arith.constant 0 : index
    %c0_60 = arith.constant 0 : index
    %138 = vector.load %arg3[%c1_58, %c0_59, %c0_60] : memref<25x8x256xbf16, #tpu.memory_space<vmem>>, vector<1x8x128xbf16>
    %139 = vector.shape_cast %138 : vector<1x8x128xbf16> to vector<8x128xbf16>
    %140 = arith.extf %139 : vector<8x128xbf16> to vector<8x128xf32>
    %141 = arith.subf %137, %140 : vector<8x128xf32>
    %142 = arith.mulf %141, %141 : vector<8x128xf32>
    %143 = arith.addf %134, %142 : vector<8x128xf32>
    %c2 = arith.constant 2 : index
    %c0_61 = arith.constant 0 : index
    %c0_62 = arith.constant 0 : index
    %144 = vector.load %arg2[%c2, %c0_61, %c0_62] : memref<25x8x256xbf16, #tpu.memory_space<vmem>>, vector<1x8x128xbf16>
    %145 = vector.shape_cast %144 : vector<1x8x128xbf16> to vector<8x128xbf16>
    %146 = arith.extf %145 : vector<8x128xbf16> to vector<8x128xf32>
    %c2_63 = arith.constant 2 : index
    %c0_64 = arith.constant 0 : index
    %c0_65 = arith.constant 0 : index
    %147 = vector.load %arg3[%c2_63, %c0_64, %c0_65] : memref<25x8x256xbf16, #tpu.memory_space<vmem>>, vector<1x8x128xbf16>
    %148 = vector.shape_cast %147 : vector<1x8x128xbf16> to vector<8x128xbf16>
    %149 = arith.extf %148 : vector<8x128xbf16> to vector<8x128xf32>
    %150 = arith.subf %146, %149 : vector<8x128xf32>
    %151 = arith.mulf %150, %150 : vector<8x128xf32>
    %152 = arith.addf %143, %151 : vector<8x128xf32>
    %c3 = arith.constant 3 : index
    %c0_66 = arith.constant 0 : index
    %c0_67 = arith.constant 0 : index
    %153 = vector.load %arg2[%c3, %c0_66, %c0_67] : memref<25x8x256xbf16, #tpu.memory_space<vmem>>, vector<1x8x128xbf16>
    %154 = vector.shape_cast %153 : vector<1x8x128xbf16> to vector<8x128xbf16>
    %155 = arith.extf %154 : vector<8x128xbf16> to vector<8x128xf32>
    %c3_68 = arith.constant 3 : index
    %c0_69 = arith.constant 0 : index
    %c0_70 = arith.constant 0 : index
    %156 = vector.load %arg3[%c3_68, %c0_69, %c0_70] : memref<25x8x256xbf16, #tpu.memory_space<vmem>>, vector<1x8x128xbf16>
    %157 = vector.shape_cast %156 : vector<1x8x128xbf16> to vector<8x128xbf16>
    %158 = arith.extf %157 : vector<8x128xbf16> to vector<8x128xf32>
    %159 = arith.subf %155, %158 : vector<8x128xf32>
    %160 = arith.mulf %159, %159 : vector<8x128xf32>
    %161 = arith.addf %152, %160 : vector<8x128xf32>
    %c4 = arith.constant 4 : index
    %c0_71 = arith.constant 0 : index
    %c0_72 = arith.constant 0 : index
    %162 = vector.load %arg2[%c4, %c0_71, %c0_72] : memref<25x8x256xbf16, #tpu.memory_space<vmem>>, vector<1x8x128xbf16>
    %163 = vector.shape_cast %162 : vector<1x8x128xbf16> to vector<8x128xbf16>
    %164 = arith.extf %163 : vector<8x128xbf16> to vector<8x128xf32>
    %c4_73 = arith.constant 4 : index
    %c0_74 = arith.constant 0 : index
    %c0_75 = arith.constant 0 : index
    %165 = vector.load %arg3[%c4_73, %c0_74, %c0_75] : memref<25x8x256xbf16, #tpu.memory_space<vmem>>, vector<1x8x128xbf16>
    %166 = vector.shape_cast %165 : vector<1x8x128xbf16> to vector<8x128xbf16>
    %167 = arith.extf %166 : vector<8x128xbf16> to vector<8x128xf32>
    %168 = arith.subf %164, %167 : vector<8x128xf32>
    %169 = arith.mulf %168, %168 : vector<8x128xf32>
    %170 = arith.addf %161, %169 : vector<8x128xf32>
    %c5 = arith.constant 5 : index
    %c0_76 = arith.constant 0 : index
    %c0_77 = arith.constant 0 : index
    %171 = vector.load %arg2[%c5, %c0_76, %c0_77] : memref<25x8x256xbf16, #tpu.memory_space<vmem>>, vector<1x8x128xbf16>
    %172 = vector.shape_cast %171 : vector<1x8x128xbf16> to vector<8x128xbf16>
    %173 = arith.extf %172 : vector<8x128xbf16> to vector<8x128xf32>
    %c5_78 = arith.constant 5 : index
    %c0_79 = arith.constant 0 : index
    %c0_80 = arith.constant 0 : index
    %174 = vector.load %arg3[%c5_78, %c0_79, %c0_80] : memref<25x8x256xbf16, #tpu.memory_space<vmem>>, vector<1x8x128xbf16>
    %175 = vector.shape_cast %174 : vector<1x8x128xbf16> to vector<8x128xbf16>
    %176 = arith.extf %175 : vector<8x128xbf16> to vector<8x128xf32>
    %177 = arith.subf %173, %176 : vector<8x128xf32>
    %178 = arith.mulf %177, %177 : vector<8x128xf32>
    %179 = arith.addf %170, %178 : vector<8x128xf32>
    %c6 = arith.constant 6 : index
    %c0_81 = arith.constant 0 : index
    %c0_82 = arith.constant 0 : index
    %180 = vector.load %arg2[%c6, %c0_81, %c0_82] : memref<25x8x256xbf16, #tpu.memory_space<vmem>>, vector<1x8x128xbf16>
    %181 = vector.shape_cast %180 : vector<1x8x128xbf16> to vector<8x128xbf16>
    %182 = arith.extf %181 : vector<8x128xbf16> to vector<8x128xf32>
    %c6_83 = arith.constant 6 : index
    %c0_84 = arith.constant 0 : index
    %c0_85 = arith.constant 0 : index
    %183 = vector.load %arg3[%c6_83, %c0_84, %c0_85] : memref<25x8x256xbf16, #tpu.memory_space<vmem>>, vector<1x8x128xbf16>
    %184 = vector.shape_cast %183 : vector<1x8x128xbf16> to vector<8x128xbf16>
    %185 = arith.extf %184 : vector<8x128xbf16> to vector<8x128xf32>
    %186 = arith.subf %182, %185 : vector<8x128xf32>
    %187 = arith.mulf %186, %186 : vector<8x128xf32>
    %188 = arith.addf %179, %187 : vector<8x128xf32>
    %c7 = arith.constant 7 : index
    %c0_86 = arith.constant 0 : index
    %c0_87 = arith.constant 0 : index
    %189 = vector.load %arg2[%c7, %c0_86, %c0_87] : memref<25x8x256xbf16, #tpu.memory_space<vmem>>, vector<1x8x128xbf16>
    %190 = vector.shape_cast %189 : vector<1x8x128xbf16> to vector<8x128xbf16>
    %191 = arith.extf %190 : vector<8x128xbf16> to vector<8x128xf32>
    %c7_88 = arith.constant 7 : index
    %c0_89 = arith.constant 0 : index
    %c0_90 = arith.constant 0 : index
    %192 = vector.load %arg3[%c7_88, %c0_89, %c0_90] : memref<25x8x256xbf16, #tpu.memory_space<vmem>>, vector<1x8x128xbf16>
    %193 = vector.shape_cast %192 : vector<1x8x128xbf16> to vector<8x128xbf16>
    %194 = arith.extf %193 : vector<8x128xbf16> to vector<8x128xf32>
    %195 = arith.subf %191, %194 : vector<8x128xf32>
    %196 = arith.mulf %195, %195 : vector<8x128xf32>
    %197 = arith.addf %188, %196 : vector<8x128xf32>
    %c8 = arith.constant 8 : index
    %c0_91 = arith.constant 0 : index
    %c0_92 = arith.constant 0 : index
    %198 = vector.load %arg2[%c8, %c0_91, %c0_92] : memref<25x8x256xbf16, #tpu.memory_space<vmem>>, vector<1x8x128xbf16>
    %199 = vector.shape_cast %198 : vector<1x8x128xbf16> to vector<8x128xbf16>
    %200 = arith.extf %199 : vector<8x128xbf16> to vector<8x128xf32>
    %c8_93 = arith.constant 8 : index
    %c0_94 = arith.constant 0 : index
    %c0_95 = arith.constant 0 : index
    %201 = vector.load %arg3[%c8_93, %c0_94, %c0_95] : memref<25x8x256xbf16, #tpu.memory_space<vmem>>, vector<1x8x128xbf16>
    %202 = vector.shape_cast %201 : vector<1x8x128xbf16> to vector<8x128xbf16>
    %203 = arith.extf %202 : vector<8x128xbf16> to vector<8x128xf32>
    %204 = arith.subf %200, %203 : vector<8x128xf32>
    %205 = arith.mulf %204, %204 : vector<8x128xf32>
    %206 = arith.addf %197, %205 : vector<8x128xf32>
    %c9 = arith.constant 9 : index
    %c0_96 = arith.constant 0 : index
    %c0_97 = arith.constant 0 : index
    %207 = vector.load %arg2[%c9, %c0_96, %c0_97] : memref<25x8x256xbf16, #tpu.memory_space<vmem>>, vector<1x8x128xbf16>
    %208 = vector.shape_cast %207 : vector<1x8x128xbf16> to vector<8x128xbf16>
    %209 = arith.extf %208 : vector<8x128xbf16> to vector<8x128xf32>
    %c9_98 = arith.constant 9 : index
    %c0_99 = arith.constant 0 : index
    %c0_100 = arith.constant 0 : index
    %210 = vector.load %arg3[%c9_98, %c0_99, %c0_100] : memref<25x8x256xbf16, #tpu.memory_space<vmem>>, vector<1x8x128xbf16>
    %211 = vector.shape_cast %210 : vector<1x8x128xbf16> to vector<8x128xbf16>
    %212 = arith.extf %211 : vector<8x128xbf16> to vector<8x128xf32>
    %213 = arith.subf %209, %212 : vector<8x128xf32>
    %214 = arith.mulf %213, %213 : vector<8x128xf32>
    %215 = arith.addf %206, %214 : vector<8x128xf32>
    %c10 = arith.constant 10 : index
    %c0_101 = arith.constant 0 : index
    %c0_102 = arith.constant 0 : index
    %216 = vector.load %arg2[%c10, %c0_101, %c0_102] : memref<25x8x256xbf16, #tpu.memory_space<vmem>>, vector<1x8x128xbf16>
    %217 = vector.shape_cast %216 : vector<1x8x128xbf16> to vector<8x128xbf16>
    %218 = arith.extf %217 : vector<8x128xbf16> to vector<8x128xf32>
    %c10_103 = arith.constant 10 : index
    %c0_104 = arith.constant 0 : index
    %c0_105 = arith.constant 0 : index
    %219 = vector.load %arg3[%c10_103, %c0_104, %c0_105] : memref<25x8x256xbf16, #tpu.memory_space<vmem>>, vector<1x8x128xbf16>
    %220 = vector.shape_cast %219 : vector<1x8x128xbf16> to vector<8x128xbf16>
    %221 = arith.extf %220 : vector<8x128xbf16> to vector<8x128xf32>
    %222 = arith.subf %218, %221 : vector<8x128xf32>
    %223 = arith.mulf %222, %222 : vector<8x128xf32>
    %224 = arith.addf %215, %223 : vector<8x128xf32>
    %c11 = arith.constant 11 : index
    %c0_106 = arith.constant 0 : index
    %c0_107 = arith.constant 0 : index
    %225 = vector.load %arg2[%c11, %c0_106, %c0_107] : memref<25x8x256xbf16, #tpu.memory_space<vmem>>, vector<1x8x128xbf16>
    %226 = vector.shape_cast %225 : vector<1x8x128xbf16> to vector<8x128xbf16>
    %227 = arith.extf %226 : vector<8x128xbf16> to vector<8x128xf32>
    %c11_108 = arith.constant 11 : index
    %c0_109 = arith.constant 0 : index
    %c0_110 = arith.constant 0 : index
    %228 = vector.load %arg3[%c11_108, %c0_109, %c0_110] : memref<25x8x256xbf16, #tpu.memory_space<vmem>>, vector<1x8x128xbf16>
    %229 = vector.shape_cast %228 : vector<1x8x128xbf16> to vector<8x128xbf16>
    %230 = arith.extf %229 : vector<8x128xbf16> to vector<8x128xf32>
    %231 = arith.subf %227, %230 : vector<8x128xf32>
    %232 = arith.mulf %231, %231 : vector<8x128xf32>
    %233 = arith.addf %224, %232 : vector<8x128xf32>
    %c12 = arith.constant 12 : index
    %c0_111 = arith.constant 0 : index
    %c0_112 = arith.constant 0 : index
    %234 = vector.load %arg2[%c12, %c0_111, %c0_112] : memref<25x8x256xbf16, #tpu.memory_space<vmem>>, vector<1x8x128xbf16>
    %235 = vector.shape_cast %234 : vector<1x8x128xbf16> to vector<8x128xbf16>
    %236 = arith.extf %235 : vector<8x128xbf16> to vector<8x128xf32>
    %c12_113 = arith.constant 12 : index
    %c0_114 = arith.constant 0 : index
    %c0_115 = arith.constant 0 : index
    %237 = vector.load %arg3[%c12_113, %c0_114, %c0_115] : memref<25x8x256xbf16, #tpu.memory_space<vmem>>, vector<1x8x128xbf16>
    %238 = vector.shape_cast %237 : vector<1x8x128xbf16> to vector<8x128xbf16>
    %239 = arith.extf %238 : vector<8x128xbf16> to vector<8x128xf32>
    %240 = arith.subf %236, %239 : vector<8x128xf32>
    %241 = arith.mulf %240, %240 : vector<8x128xf32>
    %242 = arith.addf %233, %241 : vector<8x128xf32>
    %c13 = arith.constant 13 : index
    %c0_116 = arith.constant 0 : index
    %c0_117 = arith.constant 0 : index
    %243 = vector.load %arg2[%c13, %c0_116, %c0_117] : memref<25x8x256xbf16, #tpu.memory_space<vmem>>, vector<1x8x128xbf16>
    %244 = vector.shape_cast %243 : vector<1x8x128xbf16> to vector<8x128xbf16>
    %245 = arith.extf %244 : vector<8x128xbf16> to vector<8x128xf32>
    %c13_118 = arith.constant 13 : index
    %c0_119 = arith.constant 0 : index
    %c0_120 = arith.constant 0 : index
    %246 = vector.load %arg3[%c13_118, %c0_119, %c0_120] : memref<25x8x256xbf16, #tpu.memory_space<vmem>>, vector<1x8x128xbf16>
    %247 = vector.shape_cast %246 : vector<1x8x128xbf16> to vector<8x128xbf16>
    %248 = arith.extf %247 : vector<8x128xbf16> to vector<8x128xf32>
    %249 = arith.subf %245, %248 : vector<8x128xf32>
    %250 = arith.mulf %249, %249 : vector<8x128xf32>
    %251 = arith.addf %242, %250 : vector<8x128xf32>
    %c14 = arith.constant 14 : index
    %c0_121 = arith.constant 0 : index
    %c0_122 = arith.constant 0 : index
    %252 = vector.load %arg2[%c14, %c0_121, %c0_122] : memref<25x8x256xbf16, #tpu.memory_space<vmem>>, vector<1x8x128xbf16>
    %253 = vector.shape_cast %252 : vector<1x8x128xbf16> to vector<8x128xbf16>
    %254 = arith.extf %253 : vector<8x128xbf16> to vector<8x128xf32>
    %c14_123 = arith.constant 14 : index
    %c0_124 = arith.constant 0 : index
    %c0_125 = arith.constant 0 : index
    %255 = vector.load %arg3[%c14_123, %c0_124, %c0_125] : memref<25x8x256xbf16, #tpu.memory_space<vmem>>, vector<1x8x128xbf16>
    %256 = vector.shape_cast %255 : vector<1x8x128xbf16> to vector<8x128xbf16>
    %257 = arith.extf %256 : vector<8x128xbf16> to vector<8x128xf32>
    %258 = arith.subf %254, %257 : vector<8x128xf32>
    %259 = arith.mulf %258, %258 : vector<8x128xf32>
    %260 = arith.addf %251, %259 : vector<8x128xf32>
    %c15 = arith.constant 15 : index
    %c0_126 = arith.constant 0 : index
    %c0_127 = arith.constant 0 : index
    %261 = vector.load %arg2[%c15, %c0_126, %c0_127] : memref<25x8x256xbf16, #tpu.memory_space<vmem>>, vector<1x8x128xbf16>
    %262 = vector.shape_cast %261 : vector<1x8x128xbf16> to vector<8x128xbf16>
    %263 = arith.extf %262 : vector<8x128xbf16> to vector<8x128xf32>
    %c15_128 = arith.constant 15 : index
    %c0_129 = arith.constant 0 : index
    %c0_130 = arith.constant 0 : index
    %264 = vector.load %arg3[%c15_128, %c0_129, %c0_130] : memref<25x8x256xbf16, #tpu.memory_space<vmem>>, vector<1x8x128xbf16>
    %265 = vector.shape_cast %264 : vector<1x8x128xbf16> to vector<8x128xbf16>
    %266 = arith.extf %265 : vector<8x128xbf16> to vector<8x128xf32>
    %267 = arith.subf %263, %266 : vector<8x128xf32>
    %268 = arith.mulf %267, %267 : vector<8x128xf32>
    %269 = arith.addf %260, %268 : vector<8x128xf32>
    %c16 = arith.constant 16 : index
    %c0_131 = arith.constant 0 : index
    %c0_132 = arith.constant 0 : index
    %270 = vector.load %arg2[%c16, %c0_131, %c0_132] : memref<25x8x256xbf16, #tpu.memory_space<vmem>>, vector<1x8x128xbf16>
    %271 = vector.shape_cast %270 : vector<1x8x128xbf16> to vector<8x128xbf16>
    %272 = arith.extf %271 : vector<8x128xbf16> to vector<8x128xf32>
    %c16_133 = arith.constant 16 : index
    %c0_134 = arith.constant 0 : index
    %c0_135 = arith.constant 0 : index
    %273 = vector.load %arg3[%c16_133, %c0_134, %c0_135] : memref<25x8x256xbf16, #tpu.memory_space<vmem>>, vector<1x8x128xbf16>
    %274 = vector.shape_cast %273 : vector<1x8x128xbf16> to vector<8x128xbf16>
    %275 = arith.extf %274 : vector<8x128xbf16> to vector<8x128xf32>
    %276 = arith.subf %272, %275 : vector<8x128xf32>
    %277 = arith.mulf %276, %276 : vector<8x128xf32>
    %278 = arith.addf %269, %277 : vector<8x128xf32>
    %c17 = arith.constant 17 : index
    %c0_136 = arith.constant 0 : index
    %c0_137 = arith.constant 0 : index
    %279 = vector.load %arg2[%c17, %c0_136, %c0_137] : memref<25x8x256xbf16, #tpu.memory_space<vmem>>, vector<1x8x128xbf16>
    %280 = vector.shape_cast %279 : vector<1x8x128xbf16> to vector<8x128xbf16>
    %281 = arith.extf %280 : vector<8x128xbf16> to vector<8x128xf32>
    %c17_138 = arith.constant 17 : index
    %c0_139 = arith.constant 0 : index
    %c0_140 = arith.constant 0 : index
    %282 = vector.load %arg3[%c17_138, %c0_139, %c0_140] : memref<25x8x256xbf16, #tpu.memory_space<vmem>>, vector<1x8x128xbf16>
    %283 = vector.shape_cast %282 : vector<1x8x128xbf16> to vector<8x128xbf16>
    %284 = arith.extf %283 : vector<8x128xbf16> to vector<8x128xf32>
    %285 = arith.subf %281, %284 : vector<8x128xf32>
    %286 = arith.mulf %285, %285 : vector<8x128xf32>
    %287 = arith.addf %278, %286 : vector<8x128xf32>
    %c18 = arith.constant 18 : index
    %c0_141 = arith.constant 0 : index
    %c0_142 = arith.constant 0 : index
    %288 = vector.load %arg2[%c18, %c0_141, %c0_142] : memref<25x8x256xbf16, #tpu.memory_space<vmem>>, vector<1x8x128xbf16>
    %289 = vector.shape_cast %288 : vector<1x8x128xbf16> to vector<8x128xbf16>
    %290 = arith.extf %289 : vector<8x128xbf16> to vector<8x128xf32>
    %c18_143 = arith.constant 18 : index
    %c0_144 = arith.constant 0 : index
    %c0_145 = arith.constant 0 : index
    %291 = vector.load %arg3[%c18_143, %c0_144, %c0_145] : memref<25x8x256xbf16, #tpu.memory_space<vmem>>, vector<1x8x128xbf16>
    %292 = vector.shape_cast %291 : vector<1x8x128xbf16> to vector<8x128xbf16>
    %293 = arith.extf %292 : vector<8x128xbf16> to vector<8x128xf32>
    %294 = arith.subf %290, %293 : vector<8x128xf32>
    %295 = arith.mulf %294, %294 : vector<8x128xf32>
    %296 = arith.addf %287, %295 : vector<8x128xf32>
    %c19 = arith.constant 19 : index
    %c0_146 = arith.constant 0 : index
    %c0_147 = arith.constant 0 : index
    %297 = vector.load %arg2[%c19, %c0_146, %c0_147] : memref<25x8x256xbf16, #tpu.memory_space<vmem>>, vector<1x8x128xbf16>
    %298 = vector.shape_cast %297 : vector<1x8x128xbf16> to vector<8x128xbf16>
    %299 = arith.extf %298 : vector<8x128xbf16> to vector<8x128xf32>
    %c19_148 = arith.constant 19 : index
    %c0_149 = arith.constant 0 : index
    %c0_150 = arith.constant 0 : index
    %300 = vector.load %arg3[%c19_148, %c0_149, %c0_150] : memref<25x8x256xbf16, #tpu.memory_space<vmem>>, vector<1x8x128xbf16>
    %301 = vector.shape_cast %300 : vector<1x8x128xbf16> to vector<8x128xbf16>
    %302 = arith.extf %301 : vector<8x128xbf16> to vector<8x128xf32>
    %303 = arith.subf %299, %302 : vector<8x128xf32>
    %304 = arith.mulf %303, %303 : vector<8x128xf32>
    %305 = arith.addf %296, %304 : vector<8x128xf32>
    %306 = arith.mulf %121, %121 : vector<8x128xf32>
    %307 = arith.mulf %122, %122 : vector<8x128xf32>
    %308 = arith.addf %306, %307 : vector<8x128xf32>
    %309 = arith.mulf %123, %123 : vector<8x128xf32>
    %310 = arith.addf %308, %309 : vector<8x128xf32>
    %311 = arith.mulf %124, %124 : vector<8x128xf32>
    %312 = arith.addf %310, %311 : vector<8x128xf32>
    %313 = arith.mulf %312, %46 : vector<8x128xf32>
    %314 = arith.addf %3, %313 : vector<8x128xf32>
    %315 = arith.mulf %119, %119 : vector<8x128xf32>
    %316 = arith.mulf %315, %46 : vector<8x128xf32>
    %317 = arith.addf %4, %316 : vector<8x128xf32>
    %318 = arith.mulf %120, %120 : vector<8x128xf32>
    %319 = arith.mulf %318, %50 : vector<8x128xf32>
    %320 = arith.addf %5, %319 : vector<8x128xf32>
    %321 = arith.mulf %305, %46 : vector<8x128xf32>
    %322 = arith.addf %6, %321 : vector<8x128xf32>
    %c20_151 = arith.constant 20 : index
    %c0_152 = arith.constant 0 : index
    %c128 = arith.constant 128 : index
    %323 = vector.load %arg2[%c20_151, %c0_152, %c128] : memref<25x8x256xbf16, #tpu.memory_space<vmem>>, vector<1x8x128xbf16>
    %324 = vector.shape_cast %323 : vector<1x8x128xbf16> to vector<8x128xbf16>
    %325 = arith.extf %324 : vector<8x128xbf16> to vector<8x128xf32>
    %c21_153 = arith.constant 21 : index
    %c0_154 = arith.constant 0 : index
    %c128_155 = arith.constant 128 : index
    %326 = vector.load %arg2[%c21_153, %c0_154, %c128_155] : memref<25x8x256xbf16, #tpu.memory_space<vmem>>, vector<1x8x128xbf16>
    %327 = vector.shape_cast %326 : vector<1x8x128xbf16> to vector<8x128xbf16>
    %328 = arith.extf %327 : vector<8x128xbf16> to vector<8x128xf32>
    %c22_156 = arith.constant 22 : index
    %c0_157 = arith.constant 0 : index
    %c128_158 = arith.constant 128 : index
    %329 = vector.load %arg2[%c22_156, %c0_157, %c128_158] : memref<25x8x256xbf16, #tpu.memory_space<vmem>>, vector<1x8x128xbf16>
    %330 = vector.shape_cast %329 : vector<1x8x128xbf16> to vector<8x128xbf16>
    %331 = arith.extf %330 : vector<8x128xbf16> to vector<8x128xf32>
    %c23_159 = arith.constant 23 : index
    %c0_160 = arith.constant 0 : index
    %c128_161 = arith.constant 128 : index
    %332 = vector.load %arg2[%c23_159, %c0_160, %c128_161] : memref<25x8x256xbf16, #tpu.memory_space<vmem>>, vector<1x8x128xbf16>
    %333 = vector.shape_cast %332 : vector<1x8x128xbf16> to vector<8x128xbf16>
    %334 = arith.extf %333 : vector<8x128xbf16> to vector<8x128xf32>
    %c24_162 = arith.constant 24 : index
    %c0_163 = arith.constant 0 : index
    %c128_164 = arith.constant 128 : index
    %335 = vector.load %arg2[%c24_162, %c0_163, %c128_164] : memref<25x8x256xbf16, #tpu.memory_space<vmem>>, vector<1x8x128xbf16>
    %336 = vector.shape_cast %335 : vector<1x8x128xbf16> to vector<8x128xbf16>
    %337 = arith.extf %336 : vector<8x128xbf16> to vector<8x128xf32>
    %c20_165 = arith.constant 20 : index
    %c0_166 = arith.constant 0 : index
    %c128_167 = arith.constant 128 : index
    %338 = vector.load %arg3[%c20_165, %c0_166, %c128_167] : memref<25x8x256xbf16, #tpu.memory_space<vmem>>, vector<1x8x128xbf16>
    %339 = vector.shape_cast %338 : vector<1x8x128xbf16> to vector<8x128xbf16>
    %340 = arith.extf %339 : vector<8x128xbf16> to vector<8x128xf32>
    %c21_168 = arith.constant 21 : index
    %c0_169 = arith.constant 0 : index
    %c128_170 = arith.constant 128 : index
    %341 = vector.load %arg3[%c21_168, %c0_169, %c128_170] : memref<25x8x256xbf16, #tpu.memory_space<vmem>>, vector<1x8x128xbf16>
    %342 = vector.shape_cast %341 : vector<1x8x128xbf16> to vector<8x128xbf16>
    %343 = arith.extf %342 : vector<8x128xbf16> to vector<8x128xf32>
    %c22_171 = arith.constant 22 : index
    %c0_172 = arith.constant 0 : index
    %c128_173 = arith.constant 128 : index
    %344 = vector.load %arg3[%c22_171, %c0_172, %c128_173] : memref<25x8x256xbf16, #tpu.memory_space<vmem>>, vector<1x8x128xbf16>
    %345 = vector.shape_cast %344 : vector<1x8x128xbf16> to vector<8x128xbf16>
    %346 = arith.extf %345 : vector<8x128xbf16> to vector<8x128xf32>
    %c23_174 = arith.constant 23 : index
    %c0_175 = arith.constant 0 : index
    %c128_176 = arith.constant 128 : index
    %347 = vector.load %arg3[%c23_174, %c0_175, %c128_176] : memref<25x8x256xbf16, #tpu.memory_space<vmem>>, vector<1x8x128xbf16>
    %348 = vector.shape_cast %347 : vector<1x8x128xbf16> to vector<8x128xbf16>
    %349 = arith.extf %348 : vector<8x128xbf16> to vector<8x128xf32>
    %c24_177 = arith.constant 24 : index
    %c0_178 = arith.constant 0 : index
    %c128_179 = arith.constant 128 : index
    %350 = vector.load %arg3[%c24_177, %c0_178, %c128_179] : memref<25x8x256xbf16, #tpu.memory_space<vmem>>, vector<1x8x128xbf16>
    %351 = vector.shape_cast %350 : vector<1x8x128xbf16> to vector<8x128xbf16>
    %352 = arith.extf %351 : vector<8x128xbf16> to vector<8x128xf32>
    %c0_180 = arith.constant 0 : index
    %c0_181 = arith.constant 0 : index
    %c128_182 = arith.constant 128 : index
    %353 = vector.load %arg4[%c0_180, %c0_181, %c128_182] : memref<2x8x256xbf16, #tpu.memory_space<vmem>>, vector<1x8x128xbf16>
    %354 = vector.shape_cast %353 : vector<1x8x128xbf16> to vector<8x128xbf16>
    %355 = arith.extf %354 : vector<8x128xbf16> to vector<8x128xf32>
    %c1_183 = arith.constant 1 : index
    %c0_184 = arith.constant 0 : index
    %c128_185 = arith.constant 128 : index
    %356 = vector.load %arg4[%c1_183, %c0_184, %c128_185] : memref<2x8x256xbf16, #tpu.memory_space<vmem>>, vector<1x8x128xbf16>
    %357 = vector.shape_cast %356 : vector<1x8x128xbf16> to vector<8x128xbf16>
    %358 = arith.extf %357 : vector<8x128xbf16> to vector<8x128xf32>
    %cst_186 = arith.constant 1.000000e+00 : f32
    %359 = vector.broadcast %cst_186 : f32 to vector<8x128xf32>
    %360 = arith.cmpf oeq, %340, %359 : vector<8x128xf32>
    %361 = arith.extui %360 : vector<8x128xi1> to vector<8x128xi32>
    %362 = arith.sitofp %361 : vector<8x128xi32> to vector<8x128xf32>
    %cst_187 = arith.constant 0.000000e+00 : f32
    %363 = vector.broadcast %cst_187 : f32 to vector<8x128xf32>
    %364 = arith.cmpf oeq, %340, %363 : vector<8x128xf32>
    %365 = arith.extui %364 : vector<8x128xi1> to vector<8x128xi32>
    %366 = arith.sitofp %365 : vector<8x128xi32> to vector<8x128xf32>
    %367 = arith.negf %325 : vector<8x128xf32>
    %368 = math.exp %367 : vector<8x128xf32>
    %cst_188 = arith.constant 1.000000e+00 : f32
    %369 = vector.broadcast %cst_188 : f32 to vector<8x128xf32>
    %370 = arith.addf %369, %368 : vector<8x128xf32>
    %371 = arith.divf %369, %370 : vector<8x128xf32>
    %372 = arith.negf %328 : vector<8x128xf32>
    %373 = math.exp %372 : vector<8x128xf32>
    %cst_189 = arith.constant 1.000000e+00 : f32
    %374 = vector.broadcast %cst_189 : f32 to vector<8x128xf32>
    %375 = arith.addf %374, %373 : vector<8x128xf32>
    %376 = arith.divf %374, %375 : vector<8x128xf32>
    %377 = arith.negf %331 : vector<8x128xf32>
    %378 = math.exp %377 : vector<8x128xf32>
    %cst_190 = arith.constant 1.000000e+00 : f32
    %379 = vector.broadcast %cst_190 : f32 to vector<8x128xf32>
    %380 = arith.addf %379, %378 : vector<8x128xf32>
    %381 = arith.divf %379, %380 : vector<8x128xf32>
    %382 = math.exp %334 : vector<8x128xf32>
    %383 = arith.mulf %382, %355 : vector<8x128xf32>
    %384 = math.exp %337 : vector<8x128xf32>
    %385 = arith.mulf %384, %358 : vector<8x128xf32>
    %cst_191 = arith.constant 5.000000e-01 : f32
    %386 = vector.broadcast %cst_191 : f32 to vector<8x128xf32>
    %387 = arith.mulf %386, %383 : vector<8x128xf32>
    %cst_192 = arith.constant 5.000000e-01 : f32
    %388 = vector.broadcast %cst_192 : f32 to vector<8x128xf32>
    %389 = arith.mulf %388, %385 : vector<8x128xf32>
    %cst_193 = arith.constant 5.000000e-01 : f32
    %390 = vector.broadcast %cst_193 : f32 to vector<8x128xf32>
    %391 = arith.mulf %390, %349 : vector<8x128xf32>
    %cst_194 = arith.constant 5.000000e-01 : f32
    %392 = vector.broadcast %cst_194 : f32 to vector<8x128xf32>
    %393 = arith.mulf %392, %352 : vector<8x128xf32>
    %394 = arith.addf %376, %387 : vector<8x128xf32>
    %395 = arith.addf %343, %391 : vector<8x128xf32>
    %396 = arith.minimumf %394, %395 : vector<8x128xf32>
    %397 = arith.subf %376, %387 : vector<8x128xf32>
    %398 = arith.subf %343, %391 : vector<8x128xf32>
    %399 = arith.maximumf %397, %398 : vector<8x128xf32>
    %400 = arith.subf %396, %399 : vector<8x128xf32>
    %cst_195 = arith.constant 0.000000e+00 : f32
    %401 = vector.broadcast %cst_195 : f32 to vector<8x128xf32>
    %402 = arith.maximumf %400, %401 : vector<8x128xf32>
    %403 = arith.addf %381, %389 : vector<8x128xf32>
    %404 = arith.addf %346, %393 : vector<8x128xf32>
    %405 = arith.minimumf %403, %404 : vector<8x128xf32>
    %406 = arith.subf %381, %389 : vector<8x128xf32>
    %407 = arith.subf %346, %393 : vector<8x128xf32>
    %408 = arith.maximumf %406, %407 : vector<8x128xf32>
    %409 = arith.subf %405, %408 : vector<8x128xf32>
    %cst_196 = arith.constant 0.000000e+00 : f32
    %410 = vector.broadcast %cst_196 : f32 to vector<8x128xf32>
    %411 = arith.maximumf %409, %410 : vector<8x128xf32>
    %412 = arith.mulf %402, %411 : vector<8x128xf32>
    %413 = arith.mulf %383, %385 : vector<8x128xf32>
    %414 = arith.mulf %349, %352 : vector<8x128xf32>
    %415 = math.absf %414 : vector<8x128xf32>
    %416 = arith.addf %413, %415 : vector<8x128xf32>
    %417 = arith.subf %416, %412 : vector<8x128xf32>
    %cst_197 = arith.constant 9.99999997E-7 : f32
    %418 = vector.broadcast %cst_197 : f32 to vector<8x128xf32>
    %419 = arith.addf %417, %418 : vector<8x128xf32>
    %420 = tpu.reciprocal %419 {approx = true} : vector<8x128xf32> -> vector<8x128xf32>
    %421 = arith.mulf %419, %420 : vector<8x128xf32>
    %cst_198 = arith.constant 2.000000e+00 : f32
    %422 = vector.broadcast %cst_198 : f32 to vector<8x128xf32>
    %423 = arith.subf %422, %421 : vector<8x128xf32>
    %424 = arith.mulf %420, %423 : vector<8x128xf32>
    %425 = arith.mulf %412, %424 : vector<8x128xf32>
    %426 = arith.divf %349, %355 : vector<8x128xf32>
    %cst_199 = arith.constant 1.000000e-16 : f32
    %427 = vector.broadcast %cst_199 : f32 to vector<8x128xf32>
    %428 = arith.addf %427, %426 : vector<8x128xf32>
    %429 = math.log %428 : vector<8x128xf32>
    %430 = arith.divf %352, %358 : vector<8x128xf32>
    %cst_200 = arith.constant 1.000000e-16 : f32
    %431 = vector.broadcast %cst_200 : f32 to vector<8x128xf32>
    %432 = arith.addf %431, %430 : vector<8x128xf32>
    %433 = math.log %432 : vector<8x128xf32>
    %434 = arith.mulf %425, %340 : vector<8x128xf32>
    %435 = arith.subf %371, %434 : vector<8x128xf32>
    %436 = arith.subf %371, %340 : vector<8x128xf32>
    %437 = arith.subf %376, %343 : vector<8x128xf32>
    %438 = arith.subf %381, %346 : vector<8x128xf32>
    %439 = arith.subf %334, %429 : vector<8x128xf32>
    %440 = arith.subf %337, %433 : vector<8x128xf32>
    %cst_201 = arith.constant 0.000000e+00 : f32
    %441 = vector.broadcast %cst_201 : f32 to vector<8x128xf32>
    %c0_202 = arith.constant 0 : index
    %c0_203 = arith.constant 0 : index
    %c128_204 = arith.constant 128 : index
    %442 = vector.load %arg2[%c0_202, %c0_203, %c128_204] : memref<25x8x256xbf16, #tpu.memory_space<vmem>>, vector<1x8x128xbf16>
    %443 = vector.shape_cast %442 : vector<1x8x128xbf16> to vector<8x128xbf16>
    %444 = arith.extf %443 : vector<8x128xbf16> to vector<8x128xf32>
    %c0_205 = arith.constant 0 : index
    %c0_206 = arith.constant 0 : index
    %c128_207 = arith.constant 128 : index
    %445 = vector.load %arg3[%c0_205, %c0_206, %c128_207] : memref<25x8x256xbf16, #tpu.memory_space<vmem>>, vector<1x8x128xbf16>
    %446 = vector.shape_cast %445 : vector<1x8x128xbf16> to vector<8x128xbf16>
    %447 = arith.extf %446 : vector<8x128xbf16> to vector<8x128xf32>
    %448 = arith.subf %444, %447 : vector<8x128xf32>
    %449 = arith.mulf %448, %448 : vector<8x128xf32>
    %450 = arith.addf %441, %449 : vector<8x128xf32>
    %c1_208 = arith.constant 1 : index
    %c0_209 = arith.constant 0 : index
    %c128_210 = arith.constant 128 : index
    %451 = vector.load %arg2[%c1_208, %c0_209, %c128_210] : memref<25x8x256xbf16, #tpu.memory_space<vmem>>, vector<1x8x128xbf16>
    %452 = vector.shape_cast %451 : vector<1x8x128xbf16> to vector<8x128xbf16>
    %453 = arith.extf %452 : vector<8x128xbf16> to vector<8x128xf32>
    %c1_211 = arith.constant 1 : index
    %c0_212 = arith.constant 0 : index
    %c128_213 = arith.constant 128 : index
    %454 = vector.load %arg3[%c1_211, %c0_212, %c128_213] : memref<25x8x256xbf16, #tpu.memory_space<vmem>>, vector<1x8x128xbf16>
    %455 = vector.shape_cast %454 : vector<1x8x128xbf16> to vector<8x128xbf16>
    %456 = arith.extf %455 : vector<8x128xbf16> to vector<8x128xf32>
    %457 = arith.subf %453, %456 : vector<8x128xf32>
    %458 = arith.mulf %457, %457 : vector<8x128xf32>
    %459 = arith.addf %450, %458 : vector<8x128xf32>
    %c2_214 = arith.constant 2 : index
    %c0_215 = arith.constant 0 : index
    %c128_216 = arith.constant 128 : index
    %460 = vector.load %arg2[%c2_214, %c0_215, %c128_216] : memref<25x8x256xbf16, #tpu.memory_space<vmem>>, vector<1x8x128xbf16>
    %461 = vector.shape_cast %460 : vector<1x8x128xbf16> to vector<8x128xbf16>
    %462 = arith.extf %461 : vector<8x128xbf16> to vector<8x128xf32>
    %c2_217 = arith.constant 2 : index
    %c0_218 = arith.constant 0 : index
    %c128_219 = arith.constant 128 : index
    %463 = vector.load %arg3[%c2_217, %c0_218, %c128_219] : memref<25x8x256xbf16, #tpu.memory_space<vmem>>, vector<1x8x128xbf16>
    %464 = vector.shape_cast %463 : vector<1x8x128xbf16> to vector<8x128xbf16>
    %465 = arith.extf %464 : vector<8x128xbf16> to vector<8x128xf32>
    %466 = arith.subf %462, %465 : vector<8x128xf32>
    %467 = arith.mulf %466, %466 : vector<8x128xf32>
    %468 = arith.addf %459, %467 : vector<8x128xf32>
    %c3_220 = arith.constant 3 : index
    %c0_221 = arith.constant 0 : index
    %c128_222 = arith.constant 128 : index
    %469 = vector.load %arg2[%c3_220, %c0_221, %c128_222] : memref<25x8x256xbf16, #tpu.memory_space<vmem>>, vector<1x8x128xbf16>
    %470 = vector.shape_cast %469 : vector<1x8x128xbf16> to vector<8x128xbf16>
    %471 = arith.extf %470 : vector<8x128xbf16> to vector<8x128xf32>
    %c3_223 = arith.constant 3 : index
    %c0_224 = arith.constant 0 : index
    %c128_225 = arith.constant 128 : index
    %472 = vector.load %arg3[%c3_223, %c0_224, %c128_225] : memref<25x8x256xbf16, #tpu.memory_space<vmem>>, vector<1x8x128xbf16>
    %473 = vector.shape_cast %472 : vector<1x8x128xbf16> to vector<8x128xbf16>
    %474 = arith.extf %473 : vector<8x128xbf16> to vector<8x128xf32>
    %475 = arith.subf %471, %474 : vector<8x128xf32>
    %476 = arith.mulf %475, %475 : vector<8x128xf32>
    %477 = arith.addf %468, %476 : vector<8x128xf32>
    %c4_226 = arith.constant 4 : index
    %c0_227 = arith.constant 0 : index
    %c128_228 = arith.constant 128 : index
    %478 = vector.load %arg2[%c4_226, %c0_227, %c128_228] : memref<25x8x256xbf16, #tpu.memory_space<vmem>>, vector<1x8x128xbf16>
    %479 = vector.shape_cast %478 : vector<1x8x128xbf16> to vector<8x128xbf16>
    %480 = arith.extf %479 : vector<8x128xbf16> to vector<8x128xf32>
    %c4_229 = arith.constant 4 : index
    %c0_230 = arith.constant 0 : index
    %c128_231 = arith.constant 128 : index
    %481 = vector.load %arg3[%c4_229, %c0_230, %c128_231] : memref<25x8x256xbf16, #tpu.memory_space<vmem>>, vector<1x8x128xbf16>
    %482 = vector.shape_cast %481 : vector<1x8x128xbf16> to vector<8x128xbf16>
    %483 = arith.extf %482 : vector<8x128xbf16> to vector<8x128xf32>
    %484 = arith.subf %480, %483 : vector<8x128xf32>
    %485 = arith.mulf %484, %484 : vector<8x128xf32>
    %486 = arith.addf %477, %485 : vector<8x128xf32>
    %c5_232 = arith.constant 5 : index
    %c0_233 = arith.constant 0 : index
    %c128_234 = arith.constant 128 : index
    %487 = vector.load %arg2[%c5_232, %c0_233, %c128_234] : memref<25x8x256xbf16, #tpu.memory_space<vmem>>, vector<1x8x128xbf16>
    %488 = vector.shape_cast %487 : vector<1x8x128xbf16> to vector<8x128xbf16>
    %489 = arith.extf %488 : vector<8x128xbf16> to vector<8x128xf32>
    %c5_235 = arith.constant 5 : index
    %c0_236 = arith.constant 0 : index
    %c128_237 = arith.constant 128 : index
    %490 = vector.load %arg3[%c5_235, %c0_236, %c128_237] : memref<25x8x256xbf16, #tpu.memory_space<vmem>>, vector<1x8x128xbf16>
    %491 = vector.shape_cast %490 : vector<1x8x128xbf16> to vector<8x128xbf16>
    %492 = arith.extf %491 : vector<8x128xbf16> to vector<8x128xf32>
    %493 = arith.subf %489, %492 : vector<8x128xf32>
    %494 = arith.mulf %493, %493 : vector<8x128xf32>
    %495 = arith.addf %486, %494 : vector<8x128xf32>
    %c6_238 = arith.constant 6 : index
    %c0_239 = arith.constant 0 : index
    %c128_240 = arith.constant 128 : index
    %496 = vector.load %arg2[%c6_238, %c0_239, %c128_240] : memref<25x8x256xbf16, #tpu.memory_space<vmem>>, vector<1x8x128xbf16>
    %497 = vector.shape_cast %496 : vector<1x8x128xbf16> to vector<8x128xbf16>
    %498 = arith.extf %497 : vector<8x128xbf16> to vector<8x128xf32>
    %c6_241 = arith.constant 6 : index
    %c0_242 = arith.constant 0 : index
    %c128_243 = arith.constant 128 : index
    %499 = vector.load %arg3[%c6_241, %c0_242, %c128_243] : memref<25x8x256xbf16, #tpu.memory_space<vmem>>, vector<1x8x128xbf16>
    %500 = vector.shape_cast %499 : vector<1x8x128xbf16> to vector<8x128xbf16>
    %501 = arith.extf %500 : vector<8x128xbf16> to vector<8x128xf32>
    %502 = arith.subf %498, %501 : vector<8x128xf32>
    %503 = arith.mulf %502, %502 : vector<8x128xf32>
    %504 = arith.addf %495, %503 : vector<8x128xf32>
    %c7_244 = arith.constant 7 : index
    %c0_245 = arith.constant 0 : index
    %c128_246 = arith.constant 128 : index
    %505 = vector.load %arg2[%c7_244, %c0_245, %c128_246] : memref<25x8x256xbf16, #tpu.memory_space<vmem>>, vector<1x8x128xbf16>
    %506 = vector.shape_cast %505 : vector<1x8x128xbf16> to vector<8x128xbf16>
    %507 = arith.extf %506 : vector<8x128xbf16> to vector<8x128xf32>
    %c7_247 = arith.constant 7 : index
    %c0_248 = arith.constant 0 : index
    %c128_249 = arith.constant 128 : index
    %508 = vector.load %arg3[%c7_247, %c0_248, %c128_249] : memref<25x8x256xbf16, #tpu.memory_space<vmem>>, vector<1x8x128xbf16>
    %509 = vector.shape_cast %508 : vector<1x8x128xbf16> to vector<8x128xbf16>
    %510 = arith.extf %509 : vector<8x128xbf16> to vector<8x128xf32>
    %511 = arith.subf %507, %510 : vector<8x128xf32>
    %512 = arith.mulf %511, %511 : vector<8x128xf32>
    %513 = arith.addf %504, %512 : vector<8x128xf32>
    %c8_250 = arith.constant 8 : index
    %c0_251 = arith.constant 0 : index
    %c128_252 = arith.constant 128 : index
    %514 = vector.load %arg2[%c8_250, %c0_251, %c128_252] : memref<25x8x256xbf16, #tpu.memory_space<vmem>>, vector<1x8x128xbf16>
    %515 = vector.shape_cast %514 : vector<1x8x128xbf16> to vector<8x128xbf16>
    %516 = arith.extf %515 : vector<8x128xbf16> to vector<8x128xf32>
    %c8_253 = arith.constant 8 : index
    %c0_254 = arith.constant 0 : index
    %c128_255 = arith.constant 128 : index
    %517 = vector.load %arg3[%c8_253, %c0_254, %c128_255] : memref<25x8x256xbf16, #tpu.memory_space<vmem>>, vector<1x8x128xbf16>
    %518 = vector.shape_cast %517 : vector<1x8x128xbf16> to vector<8x128xbf16>
    %519 = arith.extf %518 : vector<8x128xbf16> to vector<8x128xf32>
    %520 = arith.subf %516, %519 : vector<8x128xf32>
    %521 = arith.mulf %520, %520 : vector<8x128xf32>
    %522 = arith.addf %513, %521 : vector<8x128xf32>
    %c9_256 = arith.constant 9 : index
    %c0_257 = arith.constant 0 : index
    %c128_258 = arith.constant 128 : index
    %523 = vector.load %arg2[%c9_256, %c0_257, %c128_258] : memref<25x8x256xbf16, #tpu.memory_space<vmem>>, vector<1x8x128xbf16>
    %524 = vector.shape_cast %523 : vector<1x8x128xbf16> to vector<8x128xbf16>
    %525 = arith.extf %524 : vector<8x128xbf16> to vector<8x128xf32>
    %c9_259 = arith.constant 9 : index
    %c0_260 = arith.constant 0 : index
    %c128_261 = arith.constant 128 : index
    %526 = vector.load %arg3[%c9_259, %c0_260, %c128_261] : memref<25x8x256xbf16, #tpu.memory_space<vmem>>, vector<1x8x128xbf16>
    %527 = vector.shape_cast %526 : vector<1x8x128xbf16> to vector<8x128xbf16>
    %528 = arith.extf %527 : vector<8x128xbf16> to vector<8x128xf32>
    %529 = arith.subf %525, %528 : vector<8x128xf32>
    %530 = arith.mulf %529, %529 : vector<8x128xf32>
    %531 = arith.addf %522, %530 : vector<8x128xf32>
    %c10_262 = arith.constant 10 : index
    %c0_263 = arith.constant 0 : index
    %c128_264 = arith.constant 128 : index
    %532 = vector.load %arg2[%c10_262, %c0_263, %c128_264] : memref<25x8x256xbf16, #tpu.memory_space<vmem>>, vector<1x8x128xbf16>
    %533 = vector.shape_cast %532 : vector<1x8x128xbf16> to vector<8x128xbf16>
    %534 = arith.extf %533 : vector<8x128xbf16> to vector<8x128xf32>
    %c10_265 = arith.constant 10 : index
    %c0_266 = arith.constant 0 : index
    %c128_267 = arith.constant 128 : index
    %535 = vector.load %arg3[%c10_265, %c0_266, %c128_267] : memref<25x8x256xbf16, #tpu.memory_space<vmem>>, vector<1x8x128xbf16>
    %536 = vector.shape_cast %535 : vector<1x8x128xbf16> to vector<8x128xbf16>
    %537 = arith.extf %536 : vector<8x128xbf16> to vector<8x128xf32>
    %538 = arith.subf %534, %537 : vector<8x128xf32>
    %539 = arith.mulf %538, %538 : vector<8x128xf32>
    %540 = arith.addf %531, %539 : vector<8x128xf32>
    %c11_268 = arith.constant 11 : index
    %c0_269 = arith.constant 0 : index
    %c128_270 = arith.constant 128 : index
    %541 = vector.load %arg2[%c11_268, %c0_269, %c128_270] : memref<25x8x256xbf16, #tpu.memory_space<vmem>>, vector<1x8x128xbf16>
    %542 = vector.shape_cast %541 : vector<1x8x128xbf16> to vector<8x128xbf16>
    %543 = arith.extf %542 : vector<8x128xbf16> to vector<8x128xf32>
    %c11_271 = arith.constant 11 : index
    %c0_272 = arith.constant 0 : index
    %c128_273 = arith.constant 128 : index
    %544 = vector.load %arg3[%c11_271, %c0_272, %c128_273] : memref<25x8x256xbf16, #tpu.memory_space<vmem>>, vector<1x8x128xbf16>
    %545 = vector.shape_cast %544 : vector<1x8x128xbf16> to vector<8x128xbf16>
    %546 = arith.extf %545 : vector<8x128xbf16> to vector<8x128xf32>
    %547 = arith.subf %543, %546 : vector<8x128xf32>
    %548 = arith.mulf %547, %547 : vector<8x128xf32>
    %549 = arith.addf %540, %548 : vector<8x128xf32>
    %c12_274 = arith.constant 12 : index
    %c0_275 = arith.constant 0 : index
    %c128_276 = arith.constant 128 : index
    %550 = vector.load %arg2[%c12_274, %c0_275, %c128_276] : memref<25x8x256xbf16, #tpu.memory_space<vmem>>, vector<1x8x128xbf16>
    %551 = vector.shape_cast %550 : vector<1x8x128xbf16> to vector<8x128xbf16>
    %552 = arith.extf %551 : vector<8x128xbf16> to vector<8x128xf32>
    %c12_277 = arith.constant 12 : index
    %c0_278 = arith.constant 0 : index
    %c128_279 = arith.constant 128 : index
    %553 = vector.load %arg3[%c12_277, %c0_278, %c128_279] : memref<25x8x256xbf16, #tpu.memory_space<vmem>>, vector<1x8x128xbf16>
    %554 = vector.shape_cast %553 : vector<1x8x128xbf16> to vector<8x128xbf16>
    %555 = arith.extf %554 : vector<8x128xbf16> to vector<8x128xf32>
    %556 = arith.subf %552, %555 : vector<8x128xf32>
    %557 = arith.mulf %556, %556 : vector<8x128xf32>
    %558 = arith.addf %549, %557 : vector<8x128xf32>
    %c13_280 = arith.constant 13 : index
    %c0_281 = arith.constant 0 : index
    %c128_282 = arith.constant 128 : index
    %559 = vector.load %arg2[%c13_280, %c0_281, %c128_282] : memref<25x8x256xbf16, #tpu.memory_space<vmem>>, vector<1x8x128xbf16>
    %560 = vector.shape_cast %559 : vector<1x8x128xbf16> to vector<8x128xbf16>
    %561 = arith.extf %560 : vector<8x128xbf16> to vector<8x128xf32>
    %c13_283 = arith.constant 13 : index
    %c0_284 = arith.constant 0 : index
    %c128_285 = arith.constant 128 : index
    %562 = vector.load %arg3[%c13_283, %c0_284, %c128_285] : memref<25x8x256xbf16, #tpu.memory_space<vmem>>, vector<1x8x128xbf16>
    %563 = vector.shape_cast %562 : vector<1x8x128xbf16> to vector<8x128xbf16>
    %564 = arith.extf %563 : vector<8x128xbf16> to vector<8x128xf32>
    %565 = arith.subf %561, %564 : vector<8x128xf32>
    %566 = arith.mulf %565, %565 : vector<8x128xf32>
    %567 = arith.addf %558, %566 : vector<8x128xf32>
    %c14_286 = arith.constant 14 : index
    %c0_287 = arith.constant 0 : index
    %c128_288 = arith.constant 128 : index
    %568 = vector.load %arg2[%c14_286, %c0_287, %c128_288] : memref<25x8x256xbf16, #tpu.memory_space<vmem>>, vector<1x8x128xbf16>
    %569 = vector.shape_cast %568 : vector<1x8x128xbf16> to vector<8x128xbf16>
    %570 = arith.extf %569 : vector<8x128xbf16> to vector<8x128xf32>
    %c14_289 = arith.constant 14 : index
    %c0_290 = arith.constant 0 : index
    %c128_291 = arith.constant 128 : index
    %571 = vector.load %arg3[%c14_289, %c0_290, %c128_291] : memref<25x8x256xbf16, #tpu.memory_space<vmem>>, vector<1x8x128xbf16>
    %572 = vector.shape_cast %571 : vector<1x8x128xbf16> to vector<8x128xbf16>
    %573 = arith.extf %572 : vector<8x128xbf16> to vector<8x128xf32>
    %574 = arith.subf %570, %573 : vector<8x128xf32>
    %575 = arith.mulf %574, %574 : vector<8x128xf32>
    %576 = arith.addf %567, %575 : vector<8x128xf32>
    %c15_292 = arith.constant 15 : index
    %c0_293 = arith.constant 0 : index
    %c128_294 = arith.constant 128 : index
    %577 = vector.load %arg2[%c15_292, %c0_293, %c128_294] : memref<25x8x256xbf16, #tpu.memory_space<vmem>>, vector<1x8x128xbf16>
    %578 = vector.shape_cast %577 : vector<1x8x128xbf16> to vector<8x128xbf16>
    %579 = arith.extf %578 : vector<8x128xbf16> to vector<8x128xf32>
    %c15_295 = arith.constant 15 : index
    %c0_296 = arith.constant 0 : index
    %c128_297 = arith.constant 128 : index
    %580 = vector.load %arg3[%c15_295, %c0_296, %c128_297] : memref<25x8x256xbf16, #tpu.memory_space<vmem>>, vector<1x8x128xbf16>
    %581 = vector.shape_cast %580 : vector<1x8x128xbf16> to vector<8x128xbf16>
    %582 = arith.extf %581 : vector<8x128xbf16> to vector<8x128xf32>
    %583 = arith.subf %579, %582 : vector<8x128xf32>
    %584 = arith.mulf %583, %583 : vector<8x128xf32>
    %585 = arith.addf %576, %584 : vector<8x128xf32>
    %c16_298 = arith.constant 16 : index
    %c0_299 = arith.constant 0 : index
    %c128_300 = arith.constant 128 : index
    %586 = vector.load %arg2[%c16_298, %c0_299, %c128_300] : memref<25x8x256xbf16, #tpu.memory_space<vmem>>, vector<1x8x128xbf16>
    %587 = vector.shape_cast %586 : vector<1x8x128xbf16> to vector<8x128xbf16>
    %588 = arith.extf %587 : vector<8x128xbf16> to vector<8x128xf32>
    %c16_301 = arith.constant 16 : index
    %c0_302 = arith.constant 0 : index
    %c128_303 = arith.constant 128 : index
    %589 = vector.load %arg3[%c16_301, %c0_302, %c128_303] : memref<25x8x256xbf16, #tpu.memory_space<vmem>>, vector<1x8x128xbf16>
    %590 = vector.shape_cast %589 : vector<1x8x128xbf16> to vector<8x128xbf16>
    %591 = arith.extf %590 : vector<8x128xbf16> to vector<8x128xf32>
    %592 = arith.subf %588, %591 : vector<8x128xf32>
    %593 = arith.mulf %592, %592 : vector<8x128xf32>
    %594 = arith.addf %585, %593 : vector<8x128xf32>
    %c17_304 = arith.constant 17 : index
    %c0_305 = arith.constant 0 : index
    %c128_306 = arith.constant 128 : index
    %595 = vector.load %arg2[%c17_304, %c0_305, %c128_306] : memref<25x8x256xbf16, #tpu.memory_space<vmem>>, vector<1x8x128xbf16>
    %596 = vector.shape_cast %595 : vector<1x8x128xbf16> to vector<8x128xbf16>
    %597 = arith.extf %596 : vector<8x128xbf16> to vector<8x128xf32>
    %c17_307 = arith.constant 17 : index
    %c0_308 = arith.constant 0 : index
    %c128_309 = arith.constant 128 : index
    %598 = vector.load %arg3[%c17_307, %c0_308, %c128_309] : memref<25x8x256xbf16, #tpu.memory_space<vmem>>, vector<1x8x128xbf16>
    %599 = vector.shape_cast %598 : vector<1x8x128xbf16> to vector<8x128xbf16>
    %600 = arith.extf %599 : vector<8x128xbf16> to vector<8x128xf32>
    %601 = arith.subf %597, %600 : vector<8x128xf32>
    %602 = arith.mulf %601, %601 : vector<8x128xf32>
    %603 = arith.addf %594, %602 : vector<8x128xf32>
    %c18_310 = arith.constant 18 : index
    %c0_311 = arith.constant 0 : index
    %c128_312 = arith.constant 128 : index
    %604 = vector.load %arg2[%c18_310, %c0_311, %c128_312] : memref<25x8x256xbf16, #tpu.memory_space<vmem>>, vector<1x8x128xbf16>
    %605 = vector.shape_cast %604 : vector<1x8x128xbf16> to vector<8x128xbf16>
    %606 = arith.extf %605 : vector<8x128xbf16> to vector<8x128xf32>
    %c18_313 = arith.constant 18 : index
    %c0_314 = arith.constant 0 : index
    %c128_315 = arith.constant 128 : index
    %607 = vector.load %arg3[%c18_313, %c0_314, %c128_315] : memref<25x8x256xbf16, #tpu.memory_space<vmem>>, vector<1x8x128xbf16>
    %608 = vector.shape_cast %607 : vector<1x8x128xbf16> to vector<8x128xbf16>
    %609 = arith.extf %608 : vector<8x128xbf16> to vector<8x128xf32>
    %610 = arith.subf %606, %609 : vector<8x128xf32>
    %611 = arith.mulf %610, %610 : vector<8x128xf32>
    %612 = arith.addf %603, %611 : vector<8x128xf32>
    %c19_316 = arith.constant 19 : index
    %c0_317 = arith.constant 0 : index
    %c128_318 = arith.constant 128 : index
    %613 = vector.load %arg2[%c19_316, %c0_317, %c128_318] : memref<25x8x256xbf16, #tpu.memory_space<vmem>>, vector<1x8x128xbf16>
    %614 = vector.shape_cast %613 : vector<1x8x128xbf16> to vector<8x128xbf16>
    %615 = arith.extf %614 : vector<8x128xbf16> to vector<8x128xf32>
    %c19_319 = arith.constant 19 : index
    %c0_320 = arith.constant 0 : index
    %c128_321 = arith.constant 128 : index
    %616 = vector.load %arg3[%c19_319, %c0_320, %c128_321] : memref<25x8x256xbf16, #tpu.memory_space<vmem>>, vector<1x8x128xbf16>
    %617 = vector.shape_cast %616 : vector<1x8x128xbf16> to vector<8x128xbf16>
    %618 = arith.extf %617 : vector<8x128xbf16> to vector<8x128xf32>
    %619 = arith.subf %615, %618 : vector<8x128xf32>
    %620 = arith.mulf %619, %619 : vector<8x128xf32>
    %621 = arith.addf %612, %620 : vector<8x128xf32>
    %622 = arith.mulf %437, %437 : vector<8x128xf32>
    %623 = arith.mulf %438, %438 : vector<8x128xf32>
    %624 = arith.addf %622, %623 : vector<8x128xf32>
    %625 = arith.mulf %439, %439 : vector<8x128xf32>
    %626 = arith.addf %624, %625 : vector<8x128xf32>
    %627 = arith.mulf %440, %440 : vector<8x128xf32>
    %628 = arith.addf %626, %627 : vector<8x128xf32>
    %629 = arith.mulf %628, %362 : vector<8x128xf32>
    %630 = arith.addf %314, %629 : vector<8x128xf32>
    %631 = arith.mulf %435, %435 : vector<8x128xf32>
    %632 = arith.mulf %631, %362 : vector<8x128xf32>
    %633 = arith.addf %317, %632 : vector<8x128xf32>
    %634 = arith.mulf %436, %436 : vector<8x128xf32>
    %635 = arith.mulf %634, %366 : vector<8x128xf32>
    %636 = arith.addf %320, %635 : vector<8x128xf32>
    %637 = arith.mulf %621, %362 : vector<8x128xf32>
    %638 = arith.addf %322, %637 : vector<8x128xf32>
    %c0_322 = arith.constant 0 : index
    %c0_323 = arith.constant 0 : index
    %c0_324 = arith.constant 0 : index
    %639 = vector.load %arg6[%c0_322, %c0_323, %c0_324] : memref<4x8x128xf32, #tpu.memory_space<vmem>>, vector<1x8x128xf32>
    %640 = vector.shape_cast %639 : vector<1x8x128xf32> to vector<8x128xf32>
    %641 = arith.addf %640, %630 : vector<8x128xf32>
    %c0_325 = arith.constant 0 : index
    %c0_326 = arith.constant 0 : index
    %c0_327 = arith.constant 0 : index
    %642 = vector.load %arg6[%c0_325, %c0_326, %c0_327] : memref<4x8x128xf32, #tpu.memory_space<vmem>>, vector<1x8x128xf32>
    %643 = vector.shape_cast %642 : vector<1x8x128xf32> to vector<8x128xf32>
    %644 = vector.shape_cast %641 : vector<8x128xf32> to vector<1x8x128xf32>
    tpu.vector_store %arg6[%c0_325, %c0_326, %c0_327], %644 {strides = array<i32>} : memref<4x8x128xf32, #tpu.memory_space<vmem>>, vector<1x8x128xf32>,
    %c1_328 = arith.constant 1 : index
    %c0_329 = arith.constant 0 : index
    %c0_330 = arith.constant 0 : index
    %645 = vector.load %arg6[%c1_328, %c0_329, %c0_330] : memref<4x8x128xf32, #tpu.memory_space<vmem>>, vector<1x8x128xf32>
    %646 = vector.shape_cast %645 : vector<1x8x128xf32> to vector<8x128xf32>
    %647 = arith.addf %646, %633 : vector<8x128xf32>
    %c1_331 = arith.constant 1 : index
    %c0_332 = arith.constant 0 : index
    %c0_333 = arith.constant 0 : index
    %648 = vector.load %arg6[%c1_331, %c0_332, %c0_333] : memref<4x8x128xf32, #tpu.memory_space<vmem>>, vector<1x8x128xf32>
    %649 = vector.shape_cast %648 : vector<1x8x128xf32> to vector<8x128xf32>
    %650 = vector.shape_cast %647 : vector<8x128xf32> to vector<1x8x128xf32>
    tpu.vector_store %arg6[%c1_331, %c0_332, %c0_333], %650 {strides = array<i32>} : memref<4x8x128xf32, #tpu.memory_space<vmem>>, vector<1x8x128xf32>,
    %c2_334 = arith.constant 2 : index
    %c0_335 = arith.constant 0 : index
    %c0_336 = arith.constant 0 : index
    %651 = vector.load %arg6[%c2_334, %c0_335, %c0_336] : memref<4x8x128xf32, #tpu.memory_space<vmem>>, vector<1x8x128xf32>
    %652 = vector.shape_cast %651 : vector<1x8x128xf32> to vector<8x128xf32>
    %653 = arith.addf %652, %636 : vector<8x128xf32>
    %c2_337 = arith.constant 2 : index
    %c0_338 = arith.constant 0 : index
    %c0_339 = arith.constant 0 : index
    %654 = vector.load %arg6[%c2_337, %c0_338, %c0_339] : memref<4x8x128xf32, #tpu.memory_space<vmem>>, vector<1x8x128xf32>
    %655 = vector.shape_cast %654 : vector<1x8x128xf32> to vector<8x128xf32>
    %656 = vector.shape_cast %653 : vector<8x128xf32> to vector<1x8x128xf32>
    tpu.vector_store %arg6[%c2_337, %c0_338, %c0_339], %656 {strides = array<i32>} : memref<4x8x128xf32, #tpu.memory_space<vmem>>, vector<1x8x128xf32>,
    %c3_340 = arith.constant 3 : index
    %c0_341 = arith.constant 0 : index
    %c0_342 = arith.constant 0 : index
    %657 = vector.load %arg6[%c3_340, %c0_341, %c0_342] : memref<4x8x128xf32, #tpu.memory_space<vmem>>, vector<1x8x128xf32>
    %658 = vector.shape_cast %657 : vector<1x8x128xf32> to vector<8x128xf32>
    %659 = arith.addf %658, %638 : vector<8x128xf32>
    %c3_343 = arith.constant 3 : index
    %c0_344 = arith.constant 0 : index
    %c0_345 = arith.constant 0 : index
    %660 = vector.load %arg6[%c3_343, %c0_344, %c0_345] : memref<4x8x128xf32, #tpu.memory_space<vmem>>, vector<1x8x128xf32>
    %661 = vector.shape_cast %660 : vector<1x8x128xf32> to vector<8x128xf32>
    %662 = vector.shape_cast %659 : vector<8x128xf32> to vector<1x8x128xf32>
    tpu.vector_store %arg6[%c3_343, %c0_344, %c0_345], %662 {strides = array<i32>} : memref<4x8x128xf32, #tpu.memory_space<vmem>>, vector<1x8x128xf32>,
    %c0_i32_346 = arith.constant 0 : i32
    %663 = arith.cmpi eq, %arg1, %c0_i32_346 : i32
    %664 = arith.extui %663 : i1 to i32
    %c0_i32_347 = arith.constant 0 : i32
    %665 = arith.cmpi ne, %664, %c0_i32_347 : i32
    scf.if %665 {
      %c0_348 = arith.constant 0 : index
      %c0_349 = arith.constant 0 : index
      %c0_350 = arith.constant 0 : index
      %666 = vector.load %arg6[%c0_348, %c0_349, %c0_350] : memref<4x8x128xf32, #tpu.memory_space<vmem>>, vector<1x8x128xf32>
      %667 = vector.shape_cast %666 : vector<1x8x128xf32> to vector<8x128xf32>
      %cst_351 = arith.constant 1.000000e+01 : f32
      %668 = vector.broadcast %cst_351 : f32 to vector<8x128xf32>
      %669 = arith.mulf %668, %667 : vector<8x128xf32>
      %c1_352 = arith.constant 1 : index
      %c0_353 = arith.constant 0 : index
      %c0_354 = arith.constant 0 : index
      %670 = vector.load %arg6[%c1_352, %c0_353, %c0_354] : memref<4x8x128xf32, #tpu.memory_space<vmem>>, vector<1x8x128xf32>
      %671 = vector.shape_cast %670 : vector<1x8x128xf32> to vector<8x128xf32>
      %cst_355 = arith.constant 1.000000e+02 : f32
      %672 = vector.broadcast %cst_355 : f32 to vector<8x128xf32>
      %673 = arith.mulf %672, %671 : vector<8x128xf32>
      %c2_356 = arith.constant 2 : index
      %c0_357 = arith.constant 0 : index
      %c0_358 = arith.constant 0 : index
      %674 = vector.load %arg6[%c2_356, %c0_357, %c0_358] : memref<4x8x128xf32, #tpu.memory_space<vmem>>, vector<1x8x128xf32>
      %675 = vector.shape_cast %674 : vector<1x8x128xf32> to vector<8x128xf32>
      %cst_359 = arith.constant 5.000000e-01 : f32
      %676 = vector.broadcast %cst_359 : f32 to vector<8x128xf32>
      %677 = arith.mulf %676, %675 : vector<8x128xf32>
      %c3_360 = arith.constant 3 : index
      %c0_361 = arith.constant 0 : index
      %c0_362 = arith.constant 0 : index
      %678 = vector.load %arg6[%c3_360, %c0_361, %c0_362] : memref<4x8x128xf32, #tpu.memory_space<vmem>>, vector<1x8x128xf32>
      %679 = vector.shape_cast %678 : vector<1x8x128xf32> to vector<8x128xf32>
      %cst_363 = arith.constant 1.000000e+00 : f32
      %680 = vector.broadcast %cst_363 : f32 to vector<8x128xf32>
      %681 = arith.mulf %680, %679 : vector<8x128xf32>
      %682 = arith.addf %669, %673 : vector<8x128xf32>
      %683 = arith.addf %682, %677 : vector<8x128xf32>
      %684 = arith.addf %683, %681 : vector<8x128xf32>
      %685 = tpu.concatenate %684, %669, %673, %677, %681 in 0 : vector<8x128xf32>, vector<8x128xf32>, vector<8x128xf32>, vector<8x128xf32>, vector<8x128xf32> -> vector<40x128xf32>
      %c0_364 = arith.constant 0 : index
      %c0_365 = arith.constant 0 : index
      %c0_366 = arith.constant 0 : index
      %686 = vector.load %arg5[%c0_364, %c0_365, %c0_366] : memref<1x40x128xf32, #tpu.memory_space<vmem>>, vector<1x40x128xf32>
      %687 = vector.shape_cast %686 : vector<1x40x128xf32> to vector<40x128xf32>
      %688 = vector.shape_cast %685 : vector<40x128xf32> to vector<1x40x128xf32>
      tpu.vector_store %arg5[%c0_364, %c0_365, %c0_366], %688 {strides = array<i32>} : memref<1x40x128xf32, #tpu.memory_space<vmem>>, vector<1x40x128xf32>,
    } else {
    }
    return
  }
  func.func @transform_0(%arg0: i32, %arg1: i32) -> (i32, i32, i32) {
    %c1_i32 = arith.constant 1 : i32
    %0 = arith.muli %arg0, %c1_i32 : i32
    %1 = arith.addi %0, %arg1 : i32
    %c0_i32 = arith.constant 0 : i32
    %c0_i32_0 = arith.constant 0 : i32
    %c0_i32_1 = arith.constant 0 : i32
    return %c0_i32, %c0_i32_0, %1 : i32, i32, i32
  }
  func.func @transform_1(%arg0: i32, %arg1: i32) -> (i32, i32, i32) {
    %c1_i32 = arith.constant 1 : i32
    %0 = arith.muli %arg0, %c1_i32 : i32
    %1 = arith.addi %0, %arg1 : i32
    %c0_i32 = arith.constant 0 : i32
    %c0_i32_0 = arith.constant 0 : i32
    %c0_i32_1 = arith.constant 0 : i32
    return %c0_i32, %c0_i32_0, %1 : i32, i32, i32
  }
  func.func @transform_2(%arg0: i32, %arg1: i32) -> (i32, i32, i32) {
    %c1_i32 = arith.constant 1 : i32
    %0 = arith.muli %arg0, %c1_i32 : i32
    %1 = arith.addi %0, %arg1 : i32
    %c0_i32 = arith.constant 0 : i32
    %c0_i32_0 = arith.constant 0 : i32
    %c0_i32_1 = arith.constant 0 : i32
    return %c0_i32, %c0_i32_0, %1 : i32, i32, i32
  }
  func.func @transform_3(%arg0: i32, %arg1: i32) -> (i32, i32, i32) {
    %c0_i32 = arith.constant 0 : i32
    %c0_i32_0 = arith.constant 0 : i32
    %c0_i32_1 = arith.constant 0 : i32
    return %arg0, %c0_i32, %c0_i32_0 : i32, i32, i32
  }
}

</mosaic_0001>

<llo_original>
// kernel: yolov2_loss.2
$region0: #{yolov2_loss.2}
  #allocation0 [shape = 'u32[]', space=smem, size = 0x4, offset = 0x4, fixed_abs, tag = 'smem constant byte address 0x4 - core index']
  #allocation1 [shape = 'u32[144,128]{1,0:T(1,128)}', space=vmem, size = 0x12000, scoped, tag = 'internal scratch']
  #allocation2 [shape = 'f32[4,8,128]{2,1,0:T(8,128)}', space=vmem, size = 0x4000, scoped, tag = 'scratch operand']
  %s0 = inlined_call_operand.vmem [shape: bf16[25,8,256], index: 0, kind: input, shape index: {}]
  %s1 = inlined_call_operand.vmem [shape: bf16[25,8,256], index: 1, kind: input, shape index: {}]
  %s2 = inlined_call_operand.vmem [shape: bf16[1,2,8,256], index: 2, kind: input, shape index: {}]
  %s3 = inlined_call_operand.vmem [shape: f32[1,40,128], index: 3, kind: output, shape index: {}]
  %s4 = sld [smem:[#allocation0]]
  $region30: #{yolov2_loss.2} parent=0
    _
  %s6 = ssub.s32 1, %s4
  %s7 = scalar_select 0, %s6, %s4
  $region1: #{yolov2_loss.2} parent=0
    #allocation3 [shape = 'u8[8192]{0}', space=vmem, size = 0x2000, dematerialized = true, scoped, tag = 'FusionAdapter Buffer %fusion.1 = bf16[2,8,256]{2,1,0:T(8,128)(2,1)} fusion(%param_2.1), kind=kLoop, calls=%fused_computation.3.clone, metadata={op_name="jit(yolov2_loss)/reshape" stack_frame_id=20}']
    // Predicated region
    $region2: #{yolov2_loss.2} parent=1 // pred_check
      _
    $region3: #{yolov2_loss.2} parent=1 // pred_check_branch
      %9 = sbr.rel (0) target = $region5
    $region4: #{yolov2_loss.2} parent=1 // pred_region
      %s10 = sadd.s32 0, 0
      %s11 = smul.u32 2, %s10
      %p12 = scmp.lt.s32.totalorder %s11, 1
      %s13 = scalar_select %p12, %s11, 1
      %s14 = smul.addr %s13, 4
      %s15 = scalar_lea.vmem %s0, %s14
      %s16 = sadd.s32 0, 0
      %s17 = smul.u32 2, %s16
    $region5: #{yolov2_loss.2} parent=1 // pred_fallthru
      _
    // Predicated region
    $region6: #{yolov2_loss.2} parent=1 // pred_check
      _
    $region7: #{yolov2_loss.2} parent=1 // pred_check_branch
      %19 = sbr.rel (0) target = $region9
    $region8: #{yolov2_loss.2} parent=1 // pred_region
      %s20 = sadd.s32 0, 0
      %s21 = smul.u32 2, %s20
      %p22 = scmp.lt.s32.totalorder %s21, 1
      %s23 = scalar_select %p22, %s21, 1
      %s24 = smul.addr %s23, 4
      %s25 = scalar_lea.vmem %s1, %s24
      %s26 = sadd.s32 0, 0
      %s27 = smul.u32 2, %s26
    $region9: #{yolov2_loss.2} parent=1 // pred_fallthru
      _
    // Predicated region
    $region10: #{yolov2_loss.2} parent=1 // pred_check
      _
    $region11: #{yolov2_loss.2} parent=1 // pred_check_branch
      %29 = sbr.rel (0) target = $region13
    $region12: #{yolov2_loss.2} parent=1 // pred_region
      %s30 = sadd.s32 0, 0
      %s31 = smul.u32 2, %s30
      %p32 = scmp.lt.s32.totalorder %s31, 1
      %s33 = scalar_select %p32, %s31, 1
      %s34 = smul.addr %s33, 4
      %s35 = scalar_lea.vmem %s2, %s34
      %s36 = sadd.s32 0, 0
      %s37 = smul.u32 2, %s36
    $region13: #{yolov2_loss.2} parent=1 // pred_fallthru
      _
    %s38 = sadd.s32 0, 0
    %s39 = smul.u32 2, %s38
    %p40 = scmp.lt.s32.totalorder %s39, 1
    %s41 = scalar_select %p40, %s39, 1
    %s42 = smul.addr %s41, 4
    %s43 = scalar_lea.vmem %s0, %s42
    %s44 = sadd.s32 0, 0
    %s45 = smul.u32 2, %s44
    %p46 = scmp.lt.s32.totalorder %s45, 1
    %s47 = scalar_select %p46, %s45, 1
    %s48 = smul.addr %s47, 4
    %s49 = scalar_lea.vmem %s1, %s48
    %s50 = sadd.s32 0, 0
    %s51 = smul.u32 2, %s50
    %p52 = scmp.lt.s32.totalorder %s51, 1
    %s53 = scalar_select %p52, %s51, 1
    %s54 = smul.addr %s53, 4
    %s55 = scalar_lea.vmem %s2, %s54
    %s56 = sadd.s32 0, 0
    %s57 = smul.u32 2, %s56
    %p58 = scmp.lt.s32.totalorder %s57, 1
    %s59 = scalar_select %p58, %s57, 1
    %s60 = smul.addr %s59, 4
    %s61 = scalar_lea.vmem %s0, %s60
    %s62 = sadd.s32 0, 0
    %s63 = smul.u32 2, %s62
    %s64 = sadd.s32 0, 0
    %s65 = smul.u32 2, %s64
    %p66 = scmp.lt.s32.totalorder %s65, 1
    %s67 = scalar_select %p66, %s65, 1
    %s68 = smul.addr %s67, 4
    %s69 = scalar_lea.vmem %s1, %s68
    %s70 = sadd.s32 0, 0
    %s71 = smul.u32 2, %s70
    %s72 = sadd.s32 0, 0
    %s73 = smul.u32 2, %s72
    %p74 = scmp.lt.s32.totalorder %s73, 1
    %s75 = scalar_select %p74, %s73, 1
    %s76 = smul.addr %s75, 4
    %s77 = scalar_lea.vmem %s2, %s76
    %s78 = sadd.s32 0, 0
    %s79 = smul.u32 2, %s78
    %v80 = vld [vmem:[%s77] sm:$0xf]
    %v81 = vunpack.c.l.bf16 %v80
    %v82 = vunpack.c.h.bf16 %v80
    %v83 = vpack.c.bf16 0.0, %v81
    %85 = vst [vmem:[#allocation3] sm:$0xf] %v83
    %s86 = scalar_lea.vmem %s77, 4
    %v87 = vld [vmem:[%s86] sm:$0xf]
    %v88 = vunpack.c.l.bf16 %v87
    %v89 = vunpack.c.h.bf16 %v87
    %s90 = scalar_lea.vmem [#allocation3], 4
    %v91 = vpack.c.bf16 0.0, %v88
    %93 = vst [vmem:[%s90] sm:$0xf] %v91
    %s94 = scalar_lea.vmem %s77, 8
    %v95 = vld [vmem:[%s94] sm:$0xf]
    %v96 = vunpack.c.l.bf16 %v95
    %v97 = vunpack.c.h.bf16 %v95
    %s98 = scalar_lea.vmem [#allocation3], 8
    %v99 = vpack.c.bf16 0.0, %v96
    %101 = vst [vmem:[%s98] sm:$0xf] %v99
    %s102 = scalar_lea.vmem %s77, 12
    %v103 = vld [vmem:[%s102] sm:$0xf]
    %v104 = vunpack.c.l.bf16 %v103
    %v105 = vunpack.c.h.bf16 %v103
    %s106 = scalar_lea.vmem [#allocation3], 12
    %v107 = vpack.c.bf16 0.0, %v104
    %109 = vst [vmem:[%s106] sm:$0xf] %v107
    %p110 = scmp.eq.s32.totalorder 0, 0
    // Predicated region
    $region14: #{yolov2_loss.2} parent=1 // pred_check
      %p111 = pneg %p110
    $region15: #{yolov2_loss.2} parent=1 // pred_check_branch
      %113 = sbr.rel (%p111) target = $region17
    $region16: #{yolov2_loss.2} parent=1 // pred_region
      %114 = vst [vmem:[#allocation2] sm:$0xff] 0.0
      %115 = vst [vmem:[#allocation2 + $0x8] sm:$0xff] 0.0
      %116 = vst [vmem:[#allocation2 + $0x10] sm:$0xff] 0.0
      %117 = vst [vmem:[#allocation2 + $0x18] sm:$0xff] 0.0
    $region17: #{yolov2_loss.2} parent=1 // pred_fallthru
      _
    %s118 = scalar_lea.vmem %s61, 160
    %v119 = vld [vmem:[%s118] sm:$0xf]
    %v120 = vunpack.c.l.bf16 %v119
    %s121 = scalar_lea.vmem %s61, 168
    %v122 = vld [vmem:[%s121] sm:$0xf]
    %v123 = vunpack.c.l.bf16 %v122
    %s124 = scalar_lea.vmem %s61, 176
    %v125 = vld [vmem:[%s124] sm:$0xf]
    %v126 = vunpack.c.l.bf16 %v125
    %s127 = scalar_lea.vmem %s61, 184
    %v128 = vld [vmem:[%s127] sm:$0xf]
    %v129 = vunpack.c.l.bf16 %v128
    %s130 = scalar_lea.vmem %s61, 192
    %v131 = vld [vmem:[%s130] sm:$0xf]
    %v132 = vunpack.c.l.bf16 %v131
    %s133 = scalar_lea.vmem %s69, 160
    %v134 = vld [vmem:[%s133] sm:$0xf]
    %v135 = vunpack.c.l.bf16 %v134
    %s136 = scalar_lea.vmem %s69, 168
    %v137 = vld [vmem:[%s136] sm:$0xf]
    %v138 = vunpack.c.l.bf16 %v137
    %s139 = scalar_lea.vmem %s69, 176
    %v140 = vld [vmem:[%s139] sm:$0xf]
    %v141 = vunpack.c.l.bf16 %v140
    %s142 = scalar_lea.vmem %s69, 184
    %v143 = vld [vmem:[%s142] sm:$0xf]
    %v144 = vunpack.c.l.bf16 %v143
    %s145 = scalar_lea.vmem %s69, 192
    %v146 = vld [vmem:[%s145] sm:$0xf]
    %v147 = vunpack.c.l.bf16 %v146
    %v148 = vld [vmem:[#allocation3] sm:$0xf]
    %v149 = vunpack.c.l.bf16 %v148
    %s150 = scalar_lea.vmem [#allocation3], 8
    %v151 = vld [vmem:[%s150] sm:$0xf]
    %v152 = vunpack.c.l.bf16 %v151
    %vm153 = vcmp.eq.f32.partialorder %v135, 1.0
    %v154 = vsel %vm153, 1, 0
    %v155 = vcvt.s32.f32 %v154
    %vm156 = vcmp.eq.f32.partialorder %v135, 0.0
    %v157 = vsel %vm156, 1, 0
    %v158 = vcvt.s32.f32 %v157
    %v159 = vxor.u32 %v120, 2147483648
    %v160 = vmul.f32 %v159, 1.442695
    %v161 = vpow.pop %v160
    %v162 = vadd.f32 %v161, 1.0
    %v163 = vrcp.pop %v162
    %v164 = vmul.f32 1.0, %v163
    %v165 = vxor.u32 %v123, 2147483648
    %v166 = vmul.f32 %v165, 1.442695
    %v167 = vpow.pop %v166
    %v168 = vadd.f32 %v167, 1.0
    %v169 = vrcp.pop %v168
    %v170 = vmul.f32 1.0, %v169
    %v171 = vxor.u32 %v126, 2147483648
    %v172 = vmul.f32 %v171, 1.442695
    %v173 = vpow.pop %v172
    %v174 = vadd.f32 %v173, 1.0
    %v175 = vrcp.pop %v174
    %v176 = vmul.f32 1.0, %v175
    %v177 = vmul.f32 %v129, 1.442695
    %v178 = vpow.pop %v177
    %v179 = vmul.f32 %v178, %v149
    %v180 = vmul.f32 %v132, 1.442695
    %v181 = vpow.pop %v180
    %v182 = vmul.f32 %v181, %v152
    %v183 = vmul.f32 %v179, 0.5
    %v184 = vmul.f32 %v182, 0.5
    %v185 = vmul.f32 %v144, 0.5
    %v186 = vmul.f32 %v147, 0.5
    %v187 = vadd.f32 %v170, %v183
    %v188 = vadd.f32 %v138, %v185
    %v189 = vmin.f32 %v187, %v188
    %v190 = vsub.f32 %v170, %v183
    %v191 = vsub.f32 %v138, %v185
    %v192 = vmax.f32 %v190, %v191
    %v193 = vsub.f32 %v189, %v192
    %v194 = vmax.f32 %v193, 0.0
    %v195 = vadd.f32 %v176, %v184
    %v196 = vadd.f32 %v141, %v186
    %v197 = vmin.f32 %v195, %v196
    %v198 = vsub.f32 %v176, %v184
    %v199 = vsub.f32 %v141, %v186
    %v200 = vmax.f32 %v198, %v199
    %v201 = vsub.f32 %v197, %v200
    %v202 = vmax.f32 %v201, 0.0
    %v203 = vmul.f32 %v194, %v202
    %v204 = vmul.f32 %v179, %v182
    %v205 = vmul.f32 %v144, %v147
    %v206 = vand.u32 2147483647, %v205
    %v207 = vadd.f32 %v204, %v206
    %v208 = vsub.f32 %v207, %v203
    %v209 = vadd.f32 %v208, 1e-06
    %v210 = vrcp.pop %v209
    %v211 = vmul.f32 %v209, %v210
    %v212 = vsub.f32 2.0, %v211
    %v213 = vmul.f32 %v210, %v212
    %v214 = vmul.f32 %v203, %v213
    %v215 = vrcp.pop %v149
    %v216 = vmul.f32 %v144, %v215
    %v217 = vadd.f32 %v216, 1e-16
    %v218 = vlog2.pop %v217
    %v219 = vmul.f32 %v218, 0.6931472
    %v220 = vrcp.pop %v152
    %v221 = vmul.f32 %v147, %v220
    %v222 = vadd.f32 %v221, 1e-16
    %v223 = vlog2.pop %v222
    %v224 = vmul.f32 %v223, 0.6931472
    %v225 = vmul.f32 %v214, %v135
    %v226 = vsub.f32 %v164, %v225
    %v227 = vsub.f32 %v164, %v135
    %v228 = vsub.f32 %v170, %v138
    %v229 = vsub.f32 %v176, %v141
    %v230 = vsub.f32 %v129, %v219
    %v231 = vsub.f32 %v132, %v224
    %v232 = vld [vmem:[%s61] sm:$0xf]
    %v233 = vunpack.c.l.bf16 %v232
    %v234 = vld [vmem:[%s69] sm:$0xf]
    %v235 = vunpack.c.l.bf16 %v234
    %v236 = vsub.f32 %v233, %v235
    %v237 = vmul.f32 %v236, %v236
    %v238 = vadd.f32 %v237, 0.0
    %s239 = scalar_lea.vmem %s61, 8
    %v240 = vld [vmem:[%s239] sm:$0xf]
    %v241 = vunpack.c.l.bf16 %v240
    %s242 = scalar_lea.vmem %s69, 8
    %v243 = vld [vmem:[%s242] sm:$0xf]
    %v244 = vunpack.c.l.bf16 %v243
    %v245 = vsub.f32 %v241, %v244
    %v246 = vmul.f32 %v245, %v245
    %v247 = vadd.f32 %v238, %v246
    %s248 = scalar_lea.vmem %s61, 16
    %v249 = vld [vmem:[%s248] sm:$0xf]
    %v250 = vunpack.c.l.bf16 %v249
    %s251 = scalar_lea.vmem %s69, 16
    %v252 = vld [vmem:[%s251] sm:$0xf]
    %v253 = vunpack.c.l.bf16 %v252
    %v254 = vsub.f32 %v250, %v253
    %v255 = vmul.f32 %v254, %v254
    %v256 = vadd.f32 %v247, %v255
    %s257 = scalar_lea.vmem %s61, 24
    %v258 = vld [vmem:[%s257] sm:$0xf]
    %v259 = vunpack.c.l.bf16 %v258
    %s260 = scalar_lea.vmem %s69, 24
    %v261 = vld [vmem:[%s260] sm:$0xf]
    %v262 = vunpack.c.l.bf16 %v261
    %v263 = vsub.f32 %v259, %v262
    %v264 = vmul.f32 %v263, %v263
    %v265 = vadd.f32 %v256, %v264
    %s266 = scalar_lea.vmem %s61, 32
    %v267 = vld [vmem:[%s266] sm:$0xf]
    %v268 = vunpack.c.l.bf16 %v267
    %s269 = scalar_lea.vmem %s69, 32
    %v270 = vld [vmem:[%s269] sm:$0xf]
    %v271 = vunpack.c.l.bf16 %v270
    %v272 = vsub.f32 %v268, %v271
    %v273 = vmul.f32 %v272, %v272
    %v274 = vadd.f32 %v265, %v273
    %s275 = scalar_lea.vmem %s61, 40
    %v276 = vld [vmem:[%s275] sm:$0xf]
    %v277 = vunpack.c.l.bf16 %v276
    %s278 = scalar_lea.vmem %s69, 40
    %v279 = vld [vmem:[%s278] sm:$0xf]
    %v280 = vunpack.c.l.bf16 %v279
    %v281 = vsub.f32 %v277, %v280
    %v282 = vmul.f32 %v281, %v281
    %v283 = vadd.f32 %v274, %v282
    %s284 = scalar_lea.vmem %s61, 48
    %v285 = vld [vmem:[%s284] sm:$0xf]
    %v286 = vunpack.c.l.bf16 %v285
    %s287 = scalar_lea.vmem %s69, 48
    %v288 = vld [vmem:[%s287] sm:$0xf]
    %v289 = vunpack.c.l.bf16 %v288
    %v290 = vsub.f32 %v286, %v289
    %v291 = vmul.f32 %v290, %v290
    %v292 = vadd.f32 %v283, %v291
    %s293 = scalar_lea.vmem %s61, 56
    %v294 = vld [vmem:[%s293] sm:$0xf]
    %v295 = vunpack.c.l.bf16 %v294
    %s296 = scalar_lea.vmem %s69, 56
    %v297 = vld [vmem:[%s296] sm:$0xf]
    %v298 = vunpack.c.l.bf16 %v297
    %v299 = vsub.f32 %v295, %v298
    %v300 = vmul.f32 %v299, %v299
    %v301 = vadd.f32 %v292, %v300
    %s302 = scalar_lea.vmem %s61, 64
    %v303 = vld [vmem:[%s302] sm:$0xf]
    %v304 = vunpack.c.l.bf16 %v303
    %s305 = scalar_lea.vmem %s69, 64
    %v306 = vld [vmem:[%s305] sm:$0xf]
    %v307 = vunpack.c.l.bf16 %v306
    %v308 = vsub.f32 %v304, %v307
    %v309 = vmul.f32 %v308, %v308
    %v310 = vadd.f32 %v301, %v309
    %s311 = scalar_lea.vmem %s61, 72
    %v312 = vld [vmem:[%s311] sm:$0xf]
    %v313 = vunpack.c.l.bf16 %v312
    %s314 = scalar_lea.vmem %s69, 72
    %v315 = vld [vmem:[%s314] sm:$0xf]
    %v316 = vunpack.c.l.bf16 %v315
    %v317 = vsub.f32 %v313, %v316
    %v318 = vmul.f32 %v317, %v317
    %v319 = vadd.f32 %v310, %v318
    %s320 = scalar_lea.vmem %s61, 80
    %v321 = vld [vmem:[%s320] sm:$0xf]
    %v322 = vunpack.c.l.bf16 %v321
    %s323 = scalar_lea.vmem %s69, 80
    %v324 = vld [vmem:[%s323] sm:$0xf]
    %v325 = vunpack.c.l.bf16 %v324
    %v326 = vsub.f32 %v322, %v325
    %v327 = vmul.f32 %v326, %v326
    %v328 = vadd.f32 %v319, %v327
    %s329 = scalar_lea.vmem %s61, 88
    %v330 = vld [vmem:[%s329] sm:$0xf]
    %v331 = vunpack.c.l.bf16 %v330
    %s332 = scalar_lea.vmem %s69, 88
    %v333 = vld [vmem:[%s332] sm:$0xf]
    %v334 = vunpack.c.l.bf16 %v333
    %v335 = vsub.f32 %v331, %v334
    %v336 = vmul.f32 %v335, %v335
    %v337 = vadd.f32 %v328, %v336
    %s338 = scalar_lea.vmem %s61, 96
    %v339 = vld [vmem:[%s338] sm:$0xf]
    %v340 = vunpack.c.l.bf16 %v339
    %s341 = scalar_lea.vmem %s69, 96
    %v342 = vld [vmem:[%s341] sm:$0xf]
    %v343 = vunpack.c.l.bf16 %v342
    %v344 = vsub.f32 %v340, %v343
    %v345 = vmul.f32 %v344, %v344
    %v346 = vadd.f32 %v337, %v345
    %s347 = scalar_lea.vmem %s61, 104
    %v348 = vld [vmem:[%s347] sm:$0xf]
    %v349 = vunpack.c.l.bf16 %v348
    %s350 = scalar_lea.vmem %s69, 104
    %v351 = vld [vmem:[%s350] sm:$0xf]
    %v352 = vunpack.c.l.bf16 %v351
    %v353 = vsub.f32 %v349, %v352
    %v354 = vmul.f32 %v353, %v353
    %v355 = vadd.f32 %v346, %v354
    %s356 = scalar_lea.vmem %s61, 112
    %v357 = vld [vmem:[%s356] sm:$0xf]
    %v358 = vunpack.c.l.bf16 %v357
    %s359 = scalar_lea.vmem %s69, 112
    %v360 = vld [vmem:[%s359] sm:$0xf]
    %v361 = vunpack.c.l.bf16 %v360
    %v362 = vsub.f32 %v358, %v361
    %v363 = vmul.f32 %v362, %v362
    %v364 = vadd.f32 %v355, %v363
    %s365 = scalar_lea.vmem %s61, 120
    %v366 = vld [vmem:[%s365] sm:$0xf]
    %v367 = vunpack.c.l.bf16 %v366
    %s368 = scalar_lea.vmem %s69, 120
    %v369 = vld [vmem:[%s368] sm:$0xf]
    %v370 = vunpack.c.l.bf16 %v369
    %v371 = vsub.f32 %v367, %v370
    %v372 = vmul.f32 %v371, %v371
    %v373 = vadd.f32 %v364, %v372
    %s374 = scalar_lea.vmem %s61, 128
    %v375 = vld [vmem:[%s374] sm:$0xf]
    %v376 = vunpack.c.l.bf16 %v375
    %s377 = scalar_lea.vmem %s69, 128
    %v378 = vld [vmem:[%s377] sm:$0xf]
    %v379 = vunpack.c.l.bf16 %v378
    %v380 = vsub.f32 %v376, %v379
    %v381 = vmul.f32 %v380, %v380
    %v382 = vadd.f32 %v373, %v381
    %s383 = scalar_lea.vmem %s61, 136
    %v384 = vld [vmem:[%s383] sm:$0xf]
    %v385 = vunpack.c.l.bf16 %v384
    %s386 = scalar_lea.vmem %s69, 136
    %v387 = vld [vmem:[%s386] sm:$0xf]
    %v388 = vunpack.c.l.bf16 %v387
    %v389 = vsub.f32 %v385, %v388
    %v390 = vmul.f32 %v389, %v389
    %v391 = vadd.f32 %v382, %v390
    %s392 = scalar_lea.vmem %s61, 144
    %v393 = vld [vmem:[%s392] sm:$0xf]
    %v394 = vunpack.c.l.bf16 %v393
    %s395 = scalar_lea.vmem %s69, 144
    %v396 = vld [vmem:[%s395] sm:$0xf]
    %v397 = vunpack.c.l.bf16 %v396
    %v398 = vsub.f32 %v394, %v397
    %v399 = vmul.f32 %v398, %v398
    %v400 = vadd.f32 %v391, %v399
    %s401 = scalar_lea.vmem %s61, 152
    %v402 = vld [vmem:[%s401] sm:$0xf]
    %v403 = vunpack.c.l.bf16 %v402
    %s404 = scalar_lea.vmem %s69, 152
    %v405 = vld [vmem:[%s404] sm:$0xf]
    %v406 = vunpack.c.l.bf16 %v405
    %v407 = vsub.f32 %v403, %v406
    %v408 = vmul.f32 %v407, %v407
    %v409 = vadd.f32 %v400, %v408
    %v410 = vmul.f32 %v228, %v228
    %v411 = vmul.f32 %v229, %v229
    %v412 = vadd.f32 %v410, %v411
    %v413 = vmul.f32 %v230, %v230
    %v414 = vadd.f32 %v412, %v413
    %v415 = vmul.f32 %v231, %v231
    %v416 = vadd.f32 %v414, %v415
    %v417 = vmul.f32 %v416, %v155
    %v418 = vadd.f32 %v417, 0.0
    %v419 = vmul.f32 %v226, %v226
    %v420 = vmul.f32 %v419, %v155
    %v421 = vadd.f32 %v420, 0.0
    %v422 = vmul.f32 %v227, %v227
    %v423 = vmul.f32 %v422, %v158
    %v424 = vadd.f32 %v423, 0.0
    %v425 = vmul.f32 %v409, %v155
    %v426 = vadd.f32 %v425, 0.0
    %v427 = vld [vmem:[%s118 + $0x4] sm:$0xf]
    %v428 = vunpack.c.l.bf16 %v427
    %v429 = vld [vmem:[%s121 + $0x4] sm:$0xf]
    %v430 = vunpack.c.l.bf16 %v429
    %v431 = vld [vmem:[%s124 + $0x4] sm:$0xf]
    %v432 = vunpack.c.l.bf16 %v431
    %v433 = vld [vmem:[%s127 + $0x4] sm:$0xf]
    %v434 = vunpack.c.l.bf16 %v433
    %v435 = vld [vmem:[%s130 + $0x4] sm:$0xf]
    %v436 = vunpack.c.l.bf16 %v435
    %v437 = vld [vmem:[%s133 + $0x4] sm:$0xf]
    %v438 = vunpack.c.l.bf16 %v437
    %v439 = vld [vmem:[%s136 + $0x4] sm:$0xf]
    %v440 = vunpack.c.l.bf16 %v439
    %v441 = vld [vmem:[%s139 + $0x4] sm:$0xf]
    %v442 = vunpack.c.l.bf16 %v441
    %v443 = vld [vmem:[%s142 + $0x4] sm:$0xf]
    %v444 = vunpack.c.l.bf16 %v443
    %v445 = vld [vmem:[%s145 + $0x4] sm:$0xf]
    %v446 = vunpack.c.l.bf16 %v445
    %v447 = vld [vmem:[#allocation3 + $0x4] sm:$0xf]
    %v448 = vunpack.c.l.bf16 %v447
    %v449 = vld [vmem:[%s150 + $0x4] sm:$0xf]
    %v450 = vunpack.c.l.bf16 %v449
    %vm451 = vcmp.eq.f32.partialorder %v438, 1.0
    %v452 = vsel %vm451, 1, 0
    %v453 = vcvt.s32.f32 %v452
    %vm454 = vcmp.eq.f32.partialorder %v438, 0.0
    %v455 = vsel %vm454, 1, 0
    %v456 = vcvt.s32.f32 %v455
    %v457 = vxor.u32 %v428, 2147483648
    %v458 = vmul.f32 %v457, 1.442695
    %v459 = vpow.pop %v458
    %v460 = vadd.f32 %v459, 1.0
    %v461 = vrcp.pop %v460
    %v462 = vmul.f32 1.0, %v461
    %v463 = vxor.u32 %v430, 2147483648
    %v464 = vmul.f32 %v463, 1.442695
    %v465 = vpow.pop %v464
    %v466 = vadd.f32 %v465, 1.0
    %v467 = vrcp.pop %v466
    %v468 = vmul.f32 1.0, %v467
    %v469 = vxor.u32 %v432, 2147483648
    %v470 = vmul.f32 %v469, 1.442695
    %v471 = vpow.pop %v470
    %v472 = vadd.f32 %v471, 1.0
    %v473 = vrcp.pop %v472
    %v474 = vmul.f32 1.0, %v473
    %v475 = vmul.f32 %v434, 1.442695
    %v476 = vpow.pop %v475
    %v477 = vmul.f32 %v476, %v448
    %v478 = vmul.f32 %v436, 1.442695
    %v479 = vpow.pop %v478
    %v480 = vmul.f32 %v479, %v450
    %v481 = vmul.f32 %v477, 0.5
    %v482 = vmul.f32 %v480, 0.5
    %v483 = vmul.f32 %v444, 0.5
    %v484 = vmul.f32 %v446, 0.5
    %v485 = vadd.f32 %v468, %v481
    %v486 = vadd.f32 %v440, %v483
    %v487 = vmin.f32 %v485, %v486
    %v488 = vsub.f32 %v468, %v481
    %v489 = vsub.f32 %v440, %v483
    %v490 = vmax.f32 %v488, %v489
    %v491 = vsub.f32 %v487, %v490
    %v492 = vmax.f32 %v491, 0.0
    %v493 = vadd.f32 %v474, %v482
    %v494 = vadd.f32 %v442, %v484
    %v495 = vmin.f32 %v493, %v494
    %v496 = vsub.f32 %v474, %v482
    %v497 = vsub.f32 %v442, %v484
    %v498 = vmax.f32 %v496, %v497
    %v499 = vsub.f32 %v495, %v498
    %v500 = vmax.f32 %v499, 0.0
    %v501 = vmul.f32 %v492, %v500
    %v502 = vmul.f32 %v477, %v480
    %v503 = vmul.f32 %v444, %v446
    %v504 = vand.u32 2147483647, %v503
    %v505 = vadd.f32 %v502, %v504
    %v506 = vsub.f32 %v505, %v501
    %v507 = vadd.f32 %v506, 1e-06
    %v508 = vrcp.pop %v507
    %v509 = vmul.f32 %v507, %v508
    %v510 = vsub.f32 2.0, %v509
    %v511 = vmul.f32 %v508, %v510
    %v512 = vmul.f32 %v501, %v511
    %v513 = vrcp.pop %v448
    %v514 = vmul.f32 %v444, %v513
    %v515 = vadd.f32 %v514, 1e-16
    %v516 = vlog2.pop %v515
    %v517 = vmul.f32 %v516, 0.6931472
    %v518 = vrcp.pop %v450
    %v519 = vmul.f32 %v446, %v518
    %v520 = vadd.f32 %v519, 1e-16
    %v521 = vlog2.pop %v520
    %v522 = vmul.f32 %v521, 0.6931472
    %v523 = vmul.f32 %v512, %v438
    %v524 = vsub.f32 %v462, %v523
    %v525 = vsub.f32 %v462, %v438
    %v526 = vsub.f32 %v468, %v440
    %v527 = vsub.f32 %v474, %v442
    %v528 = vsub.f32 %v434, %v517
    %v529 = vsub.f32 %v436, %v522
    %v530 = vld [vmem:[%s61 + $0x4] sm:$0xf]
    %v531 = vunpack.c.l.bf16 %v530
    %v532 = vld [vmem:[%s69 + $0x4] sm:$0xf]
    %v533 = vunpack.c.l.bf16 %v532
    %v534 = vsub.f32 %v531, %v533
    %v535 = vmul.f32 %v534, %v534
    %v536 = vadd.f32 %v535, 0.0
    %v537 = vld [vmem:[%s239 + $0x4] sm:$0xf]
    %v538 = vunpack.c.l.bf16 %v537
    %v539 = vld [vmem:[%s242 + $0x4] sm:$0xf]
    %v540 = vunpack.c.l.bf16 %v539
    %v541 = vsub.f32 %v538, %v540
    %v542 = vmul.f32 %v541, %v541
    %v543 = vadd.f32 %v536, %v542
    %v544 = vld [vmem:[%s248 + $0x4] sm:$0xf]
    %v545 = vunpack.c.l.bf16 %v544
    %v546 = vld [vmem:[%s251 + $0x4] sm:$0xf]
    %v547 = vunpack.c.l.bf16 %v546
    %v548 = vsub.f32 %v545, %v547
    %v549 = vmul.f32 %v548, %v548
    %v550 = vadd.f32 %v543, %v549
    %v551 = vld [vmem:[%s257 + $0x4] sm:$0xf]
    %v552 = vunpack.c.l.bf16 %v551
    %v553 = vld [vmem:[%s260 + $0x4] sm:$0xf]
    %v554 = vunpack.c.l.bf16 %v553
    %v555 = vsub.f32 %v552, %v554
    %v556 = vmul.f32 %v555, %v555
    %v557 = vadd.f32 %v550, %v556
    %v558 = vld [vmem:[%s266 + $0x4] sm:$0xf]
    %v559 = vunpack.c.l.bf16 %v558
    %v560 = vld [vmem:[%s269 + $0x4] sm:$0xf]
    %v561 = vunpack.c.l.bf16 %v560
    %v562 = vsub.f32 %v559, %v561
    %v563 = vmul.f32 %v562, %v562
    %v564 = vadd.f32 %v557, %v563
    %v565 = vld [vmem:[%s275 + $0x4] sm:$0xf]
    %v566 = vunpack.c.l.bf16 %v565
    %v567 = vld [vmem:[%s278 + $0x4] sm:$0xf]
    %v568 = vunpack.c.l.bf16 %v567
    %v569 = vsub.f32 %v566, %v568
    %v570 = vmul.f32 %v569, %v569
    %v571 = vadd.f32 %v564, %v570
    %v572 = vld [vmem:[%s284 + $0x4] sm:$0xf]
    %v573 = vunpack.c.l.bf16 %v572
    %v574 = vld [vmem:[%s287 + $0x4] sm:$0xf]
    %v575 = vunpack.c.l.bf16 %v574
    %v576 = vsub.f32 %v573, %v575
    %v577 = vmul.f32 %v576, %v576
    %v578 = vadd.f32 %v571, %v577
    %v579 = vld [vmem:[%s293 + $0x4] sm:$0xf]
    %v580 = vunpack.c.l.bf16 %v579
    %v581 = vld [vmem:[%s296 + $0x4] sm:$0xf]
    %v582 = vunpack.c.l.bf16 %v581
    %v583 = vsub.f32 %v580, %v582
    %v584 = vmul.f32 %v583, %v583
    %v585 = vadd.f32 %v578, %v584
    %v586 = vld [vmem:[%s302 + $0x4] sm:$0xf]
    %v587 = vunpack.c.l.bf16 %v586
    %v588 = vld [vmem:[%s305 + $0x4] sm:$0xf]
    %v589 = vunpack.c.l.bf16 %v588
    %v590 = vsub.f32 %v587, %v589
    %v591 = vmul.f32 %v590, %v590
    %v592 = vadd.f32 %v585, %v591
    %v593 = vld [vmem:[%s311 + $0x4] sm:$0xf]
    %v594 = vunpack.c.l.bf16 %v593
    %v595 = vld [vmem:[%s314 + $0x4] sm:$0xf]
    %v596 = vunpack.c.l.bf16 %v595
    %v597 = vsub.f32 %v594, %v596
    %v598 = vmul.f32 %v597, %v597
    %v599 = vadd.f32 %v592, %v598
    %v600 = vld [vmem:[%s320 + $0x4] sm:$0xf]
    %v601 = vunpack.c.l.bf16 %v600
    %v602 = vld [vmem:[%s323 + $0x4] sm:$0xf]
    %v603 = vunpack.c.l.bf16 %v602
    %v604 = vsub.f32 %v601, %v603
    %v605 = vmul.f32 %v604, %v604
    %v606 = vadd.f32 %v599, %v605
    %v607 = vld [vmem:[%s329 + $0x4] sm:$0xf]
    %v608 = vunpack.c.l.bf16 %v607
    %v609 = vld [vmem:[%s332 + $0x4] sm:$0xf]
    %v610 = vunpack.c.l.bf16 %v609
    %v611 = vsub.f32 %v608, %v610
    %v612 = vmul.f32 %v611, %v611
    %v613 = vadd.f32 %v606, %v612
    %v614 = vld [vmem:[%s338 + $0x4] sm:$0xf]
    %v615 = vunpack.c.l.bf16 %v614
    %v616 = vld [vmem:[%s341 + $0x4] sm:$0xf]
    %v617 = vunpack.c.l.bf16 %v616
    %v618 = vsub.f32 %v615, %v617
    %v619 = vmul.f32 %v618, %v618
    %v620 = vadd.f32 %v613, %v619
    %v621 = vld [vmem:[%s347 + $0x4] sm:$0xf]
    %v622 = vunpack.c.l.bf16 %v621
    %v623 = vld [vmem:[%s350 + $0x4] sm:$0xf]
    %v624 = vunpack.c.l.bf16 %v623
    %v625 = vsub.f32 %v622, %v624
    %v626 = vmul.f32 %v625, %v625
    %v627 = vadd.f32 %v620, %v626
    %v628 = vld [vmem:[%s356 + $0x4] sm:$0xf]
    %v629 = vunpack.c.l.bf16 %v628
    %v630 = vld [vmem:[%s359 + $0x4] sm:$0xf]
    %v631 = vunpack.c.l.bf16 %v630
    %v632 = vsub.f32 %v629, %v631
    %v633 = vmul.f32 %v632, %v632
    %v634 = vadd.f32 %v627, %v633
    %v635 = vld [vmem:[%s365 + $0x4] sm:$0xf]
    %v636 = vunpack.c.l.bf16 %v635
    %v637 = vld [vmem:[%s368 + $0x4] sm:$0xf]
    %v638 = vunpack.c.l.bf16 %v637
    %v639 = vsub.f32 %v636, %v638
    %v640 = vmul.f32 %v639, %v639
    %v641 = vadd.f32 %v634, %v640
    %v642 = vld [vmem:[%s374 + $0x4] sm:$0xf]
    %v643 = vunpack.c.l.bf16 %v642
    %v644 = vld [vmem:[%s377 + $0x4] sm:$0xf]
    %v645 = vunpack.c.l.bf16 %v644
    %v646 = vsub.f32 %v643, %v645
    %v647 = vmul.f32 %v646, %v646
    %v648 = vadd.f32 %v641, %v647
    %v649 = vld [vmem:[%s383 + $0x4] sm:$0xf]
    %v650 = vunpack.c.l.bf16 %v649
    %v651 = vld [vmem:[%s386 + $0x4] sm:$0xf]
    %v652 = vunpack.c.l.bf16 %v651
    %v653 = vsub.f32 %v650, %v652
    %v654 = vmul.f32 %v653, %v653
    %v655 = vadd.f32 %v648, %v654
    %v656 = vld [vmem:[%s392 + $0x4] sm:$0xf]
    %v657 = vunpack.c.l.bf16 %v656
    %v658 = vld [vmem:[%s395 + $0x4] sm:$0xf]
    %v659 = vunpack.c.l.bf16 %v658
    %v660 = vsub.f32 %v657, %v659
    %v661 = vmul.f32 %v660, %v660
    %v662 = vadd.f32 %v655, %v661
    %v663 = vld [vmem:[%s401 + $0x4] sm:$0xf]
    %v664 = vunpack.c.l.bf16 %v663
    %v665 = vld [vmem:[%s404 + $0x4] sm:$0xf]
    %v666 = vunpack.c.l.bf16 %v665
    %v667 = vsub.f32 %v664, %v666
    %v668 = vmul.f32 %v667, %v667
    %v669 = vadd.f32 %v662, %v668
    %v670 = vmul.f32 %v526, %v526
    %v671 = vmul.f32 %v527, %v527
    %v672 = vadd.f32 %v670, %v671
    %v673 = vmul.f32 %v528, %v528
    %v674 = vadd.f32 %v672, %v673
    %v675 = vmul.f32 %v529, %v529
    %v676 = vadd.f32 %v674, %v675
    %v677 = vmul.f32 %v676, %v453
    %v678 = vadd.f32 %v418, %v677
    %v679 = vmul.f32 %v524, %v524
    %v680 = vmul.f32 %v679, %v453
    %v681 = vadd.f32 %v421, %v680
    %v682 = vmul.f32 %v525, %v525
    %v683 = vmul.f32 %v682, %v456
    %v684 = vadd.f32 %v424, %v683
    %v685 = vmul.f32 %v669, %v453
    %v686 = vadd.f32 %v426, %v685
    %v687 = vld [vmem:[#allocation2] sm:$0xff]
    %v688 = vadd.f32 %v687, %v678
    %689 = vst [vmem:[#allocation2] sm:$0xff] %v688
    %s690 = scalar_lea.vmem [#allocation2], 8
    %v691 = vld [vmem:[%s690] sm:$0xff]
    %v692 = vadd.f32 %v691, %v681
    %693 = vst [vmem:[%s690] sm:$0xff] %v692
    %s694 = scalar_lea.vmem [#allocation2], 16
    %v695 = vld [vmem:[%s694] sm:$0xff]
    %v696 = vadd.f32 %v695, %v684
    %697 = vst [vmem:[%s694] sm:$0xff] %v696
    %s698 = scalar_lea.vmem [#allocation2], 24
    %v699 = vld [vmem:[%s698] sm:$0xff]
    %v700 = vadd.f32 %v699, %v686
    %701 = vst [vmem:[%s698] sm:$0xff] %v700
    // Predicated region
    $region18: #{yolov2_loss.2} parent=1 // pred_check
      %p702 = pneg %p110
    $region19: #{yolov2_loss.2} parent=1 // pred_check_branch
      %704 = sbr.rel (%p702) target = $region21
    $region20: #{yolov2_loss.2} parent=1 // pred_region
      %v705 = vld [vmem:[#allocation2] sm:$0xff]
      %v706 = vmul.f32 %v705, 10.0
      %v707 = vld [vmem:[%s690] sm:$0xff]
      %v708 = vmul.f32 %v707, 100.0
      %v709 = vld [vmem:[%s694] sm:$0xff]
      %v710 = vmul.f32 %v709, 0.5
      %v711 = vld [vmem:[%s698] sm:$0xff]
      %v712 = vadd.f32 %v706, %v708
      %v713 = vadd.f32 %v712, %v710
      %v714 = vadd.f32 %v713, %v711
      %715 = vst [vmem:[%s3] sm:$0xff] %v714
      %716 = vst [vmem:[%s3 + $0x8] sm:$0xff] %v706
      %717 = vst [vmem:[%s3 + $0x10] sm:$0xff] %v708
      %718 = vst [vmem:[%s3 + $0x18] sm:$0xff] %v710
      %719 = vst [vmem:[%s3 + $0x20] sm:$0xff] %v711
    $region21: #{yolov2_loss.2} parent=1 // pred_fallthru
      _
    // Predicated region
    $region22: #{yolov2_loss.2} parent=1 // pred_check
      _
    $region23: #{yolov2_loss.2} parent=1 // pred_check_branch
      %721 = sbr.rel (0) target = $region25
    $region24: #{yolov2_loss.2} parent=1 // pred_region
      _
    $region25: #{yolov2_loss.2} parent=1 // pred_fallthru
      _
    // Predicated region
    $region26: #{yolov2_loss.2} parent=1 // pred_check
      _
    $region27: #{yolov2_loss.2} parent=1 // pred_check_branch
      %723 = sbr.rel (0) target = $region29
    $region28: #{yolov2_loss.2} parent=1 // pred_region
      _
    $region29: #{yolov2_loss.2} parent=1 // pred_fallthru
      _

</llo_original>
